<compile_context>
chip_gen: v7x
topology: tpu7x:2x2x1
jax: 0.10.0
libtpu: 0.0.40
codegen_flags: <defaults>
</compile_context>

<pallas_src>
import jax
import jax.numpy as jnp
from jax import lax
from jax.experimental import pallas as pl
from jax.experimental.pallas import tpu as pltpu

PARAM_KEYS = ("w1", "aw1", "ab1", "w2", "aw2", "ab2", "w3", "b3", "s3")


def _coupling_kernel(xcol_ref, x2_ref, w1_ref, ab1_ref, w2_ref, ab2_ref,
                     w3_ref, b3_ref, y2_ref, ld_ref):
    # Per-tile shapes:
    #   xcol_ref : ((tile_h+2)*W, 9*Cin)  bf16  conv1 im2col incl. 1-row halo
    #   x2_ref   : (tile_h, W*C2)         f32
    #   w1_ref   : (9*Cin, width)         bf16  (ActNorm1 scale folded in)
    #   ab1_ref  : (1, width)             f32
    #   w2_ref   : (width, width)         bf16  (ActNorm2 scale folded in)
    #   ab2_ref  : (1, width)             f32
    #   w3_ref   : (width, 9*Cout)        bf16  (exp(3*s3) folded, channels permuted)
    #   b3_ref   : (1, Cout)              f32   (exp(3*s3) and sigmoid "+2" folded)
    #   y2_ref   : (tile_h, W*C2)         f32
    #   ld_ref   : (1, 1)                 f32   per-tile logdet partial
    tile_h, wc2 = x2_ref.shape
    cout = b3_ref.shape[1]
    c2 = cout // 2
    w = wc2 // c2
    hh = tile_h + 2
    t = pl.program_id(1)
    num_t = pl.num_programs(1)

    # conv1 (3x3 via wrapper-side im2col, one MXU push) + ActNorm1 bias + ReLU.
    a1 = jnp.dot(xcol_ref[...], w1_ref[...], preferred_element_type=jnp.float32)
    a1 = jnp.maximum(a1 + ab1_ref[...], 0.0)
    # conv2 (1x1, one MXU push) + ActNorm2 bias + ReLU.
    a2 = jnp.dot(a1.astype(jnp.bfloat16), w2_ref[...],
                 preferred_element_type=jnp.float32)
    a2 = jnp.maximum(a2 + ab2_ref[...], 0.0)
    # conv3 (Conv2dZeros 3x3): one MXU push producing all 9 tap partials.
    part = jnp.dot(a2.astype(jnp.bfloat16), w3_ref[...],
                   preferred_element_type=jnp.float32)
    part = part.reshape(hh, w, 9 * cout)

    # Zero the partials on halo rows that fall outside the image
    # (== conv3's zero padding along H).
    rid = lax.broadcasted_iota(jnp.int32, (hh, 1, 1), 0)
    valid = jnp.logical_and(jnp.logical_or(rid != 0, t != 0),
                            jnp.logical_or(rid != hh - 1, t != num_t - 1))
    part = jnp.where(valid, part, 0.0)

    # Tap-sum: 9 spatially shifted VPU adds, zero-padded along W.
    zcol = jnp.zeros((tile_h, 1, cout), jnp.float32)
    acc = jnp.zeros((tile_h, w, cout), jnp.float32)
    for dy in range(3):
        for dx in range(3):
            tap = dy * 3 + dx
            p = part[dy:dy + tile_h, :, tap * cout:(tap + 1) * cout]
            if dx == 0:
                p = jnp.concatenate([zcol, p[:, :w - 1, :]], axis=1)
            elif dx == 2:
                p = jnp.concatenate([p[:, 1:, :], zcol], axis=1)
            acc = acc + p
    h3 = acc + b3_ref[...].reshape(1, 1, cout)

    # Affine coupling.  conv3 output channels were pre-permuted in the wrapper
    # so shift = first half, scale = second half (== torch h[:,0::2]/h[:,1::2]).
    shift = h3[..., :c2]
    scale = jax.nn.sigmoid(h3[..., c2:])          # "+2" folded into b3
    x2 = x2_ref[...].reshape(tile_h, w, c2)
    y2 = (x2 + shift) * scale
    y2_ref[...] = y2.reshape(tile_h, w * c2)

    logs = jnp.log(scale)
    ld = jnp.sum(logs, axis=2)
    ld = jnp.sum(ld, axis=1, keepdims=True)
    ld_ref[...] = jnp.sum(ld, axis=0, keepdims=True)


def affine_coupling_forward(x_nchw, cond_nchw, params, *, tile_h=None):
    """Forward of AffineCouplingLayer (coupling_net='wide'). Returns (y, logdet)."""
    w1, aw1, ab1, w2, aw2, ab2, w3, b3, s3 = (params[k] for k in PARAM_KEYS)
    N, C, H, W = x_nchw.shape
    assert C % 2 == 0, "odd in_features not implemented"
    C1 = C // 2
    C2 = C - C1
    Cin = w1.shape[2]
    width = w1.shape[3]
    Cout = w3.shape[3]
    assert Cout == 2 * C2

    if tile_h is None:
        divs = [d for d in range(1, H + 1) if H % d == 0]
        good = [d for d in divs if d * W >= 256 and (d % 8 == 0 or d == H)]
        tile_h = good[0] if good else H
    assert H % tile_h == 0
    num_ht = H // tile_h
    K1 = 9 * Cin
    M_halo = (tile_h + 2) * W

    f32, bf16 = jnp.float32, jnp.bfloat16
    x = jnp.transpose(x_nchw, (0, 2, 3, 1)).astype(f32)        # NHWC
    cond = jnp.transpose(cond_nchw, (0, 2, 3, 1)).astype(f32)
    x1, x2 = x[..., :C1], x[..., C1:]
    xc = jnp.concatenate([x1, cond], axis=-1)                   # (N,H,W,Cin)

    # conv1 im2col ('SAME' zero padding), wrapper-side (Cin tiny -> cheap).
    xc_pad = jnp.pad(xc, ((0, 0), (1, 1), (1, 1), (0, 0)))
    cols = [xc_pad[:, dy:dy + H, dx:dx + W, :]
            for dy in range(3) for dx in range(3)]
    xcol = jnp.concatenate(cols, axis=-1)                       # (N,H,W,9*Cin)

    # Per-tile slabs with a 1-row halo top/bottom (zeros outside the image).
    xcol_hpad = jnp.pad(xcol, ((0, 0), (1, 1), (0, 0), (0, 0)))
    slabs = jnp.stack(
        [xcol_hpad[:, t * tile_h:t * tile_h + tile_h + 2] for t in range(num_ht)],
        axis=1)                                                 # (N,T,tile_h+2,W,K1)
    xslab = slabs.reshape(N, num_ht, M_halo, K1).astype(bf16)

    # Fold ActNorm scales into conv weights; Conv2dZeros' exp(3*s3) and the
    # sigmoid "+2" into conv3 weight/bias; permute conv3 output channels so
    # shift (even) channels come first and scale (odd) channels second.
    w1col = (w1.reshape(K1, width) * aw1[None, :]).astype(bf16)
    w2eff = (w2 * aw2[None, :]).astype(bf16)
    perm = jnp.concatenate([jnp.arange(0, Cout, 2), jnp.arange(1, Cout, 2)])
    e3 = jnp.exp(s3 * 3.0)
    w3p = w3[..., perm] * e3[perm][None, None, None, :]
    w3stack = jnp.transpose(w3p, (2, 0, 1, 3)).reshape(width, 9 * Cout).astype(bf16)
    b3p = b3[perm] * e3[perm] + jnp.concatenate(
        [jnp.zeros((C2,), f32), jnp.full((Cout - C2,), 2.0, f32)])
    b3p = b3p.reshape(1, Cout).astype(f32)
    ab1r = ab1.reshape(1, width).astype(f32)
    ab2r = ab2.reshape(1, width).astype(f32)

    x2flat = x2.reshape(N, H, W * C2)

    y2flat, ld_part = pl.pallas_call(
        _coupling_kernel,
        out_shape=(jax.ShapeDtypeStruct((N, H, W * C2), f32),
                   jax.ShapeDtypeStruct((N, num_ht, 1, 1), f32)),
        grid=(N, num_ht),
        in_specs=[
            pl.BlockSpec((None, None, M_halo, K1), lambda n, t: (n, t, 0, 0)),
            pl.BlockSpec((None, tile_h, W * C2), lambda n, t: (n, t, 0)),
            pl.BlockSpec((K1, width), lambda n, t: (0, 0)),
            pl.BlockSpec((1, width), lambda n, t: (0, 0)),
            pl.BlockSpec((width, width), lambda n, t: (0, 0)),
            pl.BlockSpec((1, width), lambda n, t: (0, 0)),
            pl.BlockSpec((width, 9 * Cout), lambda n, t: (0, 0)),
            pl.BlockSpec((1, Cout), lambda n, t: (0, 0)),
        ],
        out_specs=(
            pl.BlockSpec((None, tile_h, W * C2), lambda n, t: (n, t, 0)),
            pl.BlockSpec((None, None, 1, 1), lambda n, t: (n, t, 0, 0)),
        ),
        compiler_params=pltpu.CompilerParams(
            dimension_semantics=("parallel", "parallel"),
            vmem_limit_bytes=32 * 1024 * 1024),
    )(xslab, x2flat, w1col, ab1r, w2eff, ab2r, w3stack, b3p)

    y2 = y2flat.reshape(N, H, W, C2)
    y = jnp.concatenate([x1, y2], axis=-1)
    logdet = ld_part.reshape(N, num_ht).sum(axis=1)
    return jnp.transpose(y, (0, 3, 1, 2)), logdet


def _reference_forward(x_nchw, cond_nchw, params):
    """Pure-JAX (XLA, f32) reference mirroring the PyTorch forward exactly."""
    w1, aw1, ab1, w2, aw2, ab2, w3, b3, s3 = (params[k] for k in PARAM_KEYS)
    N, C, H, W = x_nchw.shape
    C1 = C // 2
    width = w2.shape[0]

    x = jnp.transpose(x_nchw, (0, 2, 3, 1)).astype(jnp.float32)
    cond = jnp.transpose(cond_nchw, (0, 2, 3, 1)).astype(jnp.float32)
    x1, x2 = x[..., :C1], x[..., C1:]
    xc = jnp.concatenate([x1, cond], axis=-1)

    dn = ("NHWC", "HWIO", "NHWC")
    h = lax.conv_general_dilated(xc, w1, (1, 1), "SAME", dimension_numbers=dn)
    h = jnp.maximum(h * aw1 + ab1, 0.0)
    h = lax.conv_general_dilated(h, w2.reshape(1, 1, width, width), (1, 1),
                                 "SAME", dimension_numbers=dn)
    h = jnp.maximum(h * aw2 + ab2, 0.0)
    h = lax.conv_general_dilated(h, w3, (1, 1), "SAME", dimension_numbers=dn) + b3
    h = h * jnp.exp(s3 * 3.0)

    shift = h[..., 0::2]
    scale = jax.nn.sigmoid(h[..., 1::2] + 2.0)
    y2 = (x2 + shift) * scale
    logdet = jnp.sum(jnp.log(scale).reshape(N, -1), axis=1)
    y = jnp.concatenate([x1, y2], axis=-1)
    return jnp.transpose(y, (0, 3, 1, 2)), logdet


if __name__ == "__main__":
    # Small shapes consistent with the module: NCHW input, even channel count.
    N, C, Cc, H, W = 2, 4, 4, 16, 16       # in_features=4, cond_features=4
    width = 128                             # _CouplingNN default width
    C1 = C // 2
    Cin_nn = C1 + Cc                        # in_channels of the coupling net
    Cout_nn = C                             # out_channels (even in_features)

    keys = jax.random.split(jax.random.PRNGKey(0), 11)
    x = jax.random.normal(keys[0], (N, C, H, W), jnp.float32)
    cond = jax.random.normal(keys[1], (N, Cc, H, W), jnp.float32)

    # Deterministic synthetic parameters (module init shapes; random non-zero
    # values instead of Conv2dZeros' zero-init so the hot path is exercised).
    params = dict(
        w1=0.1 * jax.random.normal(keys[2], (3, 3, Cin_nn, width), jnp.float32),
        aw1=1.0 + 0.1 * jax.random.normal(keys[3], (width,), jnp.float32),
        ab1=0.1 * jax.random.normal(keys[4], (width,), jnp.float32),
        w2=0.1 * jax.random.normal(keys[5], (width, width), jnp.float32),
        aw2=1.0 + 0.1 * jax.random.normal(keys[6], (width,), jnp.float32),
        ab2=0.1 * jax.random.normal(keys[7], (width,), jnp.float32),
        w3=0.05 * jax.random.normal(keys[8], (3, 3, width, Cout_nn), jnp.float32),
        b3=0.1 * jax.random.normal(keys[9], (Cout_nn,), jnp.float32),
        s3=0.1 * jax.random.normal(keys[10], (Cout_nn,), jnp.float32),
    )

    y_ref, logdet_ref = _reference_forward(x, cond, params)

    # tile_h=8 -> 2 row-tiles per image: exercises the halo / multi-tile path.
    y, logdet = affine_coupling_forward(x, cond, params, tile_h=8)
    y, logdet = jax.block_until_ready((y, logdet))

    assert y.shape == (N, C, H, W), y.shape
    assert logdet.shape == (N,), logdet.shape
    assert bool(jnp.all(jnp.isfinite(y))) and bool(jnp.all(jnp.isfinite(logdet)))
    assert jnp.allclose(y, y_ref, rtol=5e-2, atol=8e-2), \
        float(jnp.max(jnp.abs(y - y_ref)))
    assert jnp.allclose(logdet, logdet_ref, rtol=5e-2, atol=5e-1), \
        float(jnp.max(jnp.abs(logdet - logdet_ref)))

    # Auto tile selection (single tile per image here): masks both halo rows.
    y1t, ld1t = affine_coupling_forward(x, cond, params)
    y1t, ld1t = jax.block_until_ready((y1t, ld1t))
    assert jnp.allclose(y1t, y_ref, rtol=5e-2, atol=8e-2), \
        float(jnp.max(jnp.abs(y1t - y_ref)))
    assert jnp.allclose(ld1t, logdet_ref, rtol=5e-2, atol=5e-1), \
        float(jnp.max(jnp.abs(ld1t - logdet_ref)))

    print("KERNEL_OK")
</pallas_src>

<mosaic_0001>
module attributes {stable_mosaic.version = 11 : i64} {
  func.func @_coupling_kernel(%arg0: i32, %arg1: i32, %arg2: memref<1x1x160x54xbf16, #tpu.memory_space<vmem>>, %arg3: memref<1x8x32xf32, #tpu.memory_space<vmem>>, %arg4: memref<54x128xbf16, #tpu.memory_space<vmem>>, %arg5: memref<1x128xf32, #tpu.memory_space<vmem>>, %arg6: memref<128x128xbf16, #tpu.memory_space<vmem>>, %arg7: memref<1x128xf32, #tpu.memory_space<vmem>>, %arg8: memref<128x36xbf16, #tpu.memory_space<vmem>>, %arg9: memref<1x4xf32, #tpu.memory_space<vmem>>, %arg10: memref<1x8x32xf32, #tpu.memory_space<vmem>>, %arg11: memref<1x1x1x1xf32, #tpu.memory_space<vmem>>) attributes {dimension_semantics = [#tpu.dimension_semantics<parallel>, #tpu.dimension_semantics<parallel>], iteration_bounds = array<i64: 2, 2>, scalar_prefetch = 0 : i64, scratch_operands = 0 : i64, tpu.core_type = #tpu.core_type<tc>, window_params = [{transform_indices = @transform_0, window_bounds = array<i64: 1, 1, 160, 54>}, {transform_indices = @transform_1, window_bounds = array<i64: 1, 8, 32>}, {pipeline_mode = #tpu.pipeline_mode<synchronous>, transform_indices = @transform_2, window_bounds = array<i64: 54, 128>}, {pipeline_mode = #tpu.pipeline_mode<synchronous>, transform_indices = @transform_3, window_bounds = array<i64: 1, 128>}, {pipeline_mode = #tpu.pipeline_mode<synchronous>, transform_indices = @transform_4, window_bounds = array<i64: 128, 128>}, {pipeline_mode = #tpu.pipeline_mode<synchronous>, transform_indices = @transform_5, window_bounds = array<i64: 1, 128>}, {pipeline_mode = #tpu.pipeline_mode<synchronous>, transform_indices = @transform_6, window_bounds = array<i64: 128, 36>}, {pipeline_mode = #tpu.pipeline_mode<synchronous>, transform_indices = @transform_7, window_bounds = array<i64: 1, 4>}, {transform_indices = @transform_8, window_bounds = array<i64: 1, 8, 32>}, {transform_indices = @transform_9, window_bounds = array<i64: 1, 1, 1, 1>}]} {
    %c0 = arith.constant 0 : index
    %c0_0 = arith.constant 0 : index
    %c0_1 = arith.constant 0 : index
    %c0_2 = arith.constant 0 : index
    %0 = vector.load %arg2[%c0, %c0_0, %c0_1, %c0_2] : memref<1x1x160x54xbf16, #tpu.memory_space<vmem>>, vector<1x1x160x54xbf16>
    %1 = vector.shape_cast %0 : vector<1x1x160x54xbf16> to vector<160x54xbf16>
    %c0_3 = arith.constant 0 : index
    %c0_4 = arith.constant 0 : index
    %2 = vector.load %arg4[%c0_3, %c0_4] : memref<54x128xbf16, #tpu.memory_space<vmem>>, vector<54x128xbf16>
    %cst = arith.constant dense<0.000000e+00> : vector<160x128xf32>
    %3 = tpu.matmul %1, %2, %cst {dimension_numbers = #tpu.dot_dimension_numbers<[1], [0], [0], [1], [0, 0, 1, 1], [], []>} : vector<160x54xbf16>, vector<54x128xbf16>, vector<160x128xf32> -> vector<160x128xf32>
    %c0_5 = arith.constant 0 : index
    %c0_6 = arith.constant 0 : index
    %4 = vector.load %arg5[%c0_5, %c0_6] : memref<1x128xf32, #tpu.memory_space<vmem>>, vector<1x128xf32>
    %5 = vector.broadcast %4 : vector<1x128xf32> to vector<160x128xf32>
    %6 = arith.addf %3, %5 : vector<160x128xf32>
    %cst_7 = arith.constant 0.000000e+00 : f32
    %7 = vector.broadcast %cst_7 : f32 to vector<160x128xf32>
    %8 = arith.maximumf %6, %7 : vector<160x128xf32>
    %9 = arith.truncf %8 : vector<160x128xf32> to vector<160x128xbf16>
    %c0_8 = arith.constant 0 : index
    %c0_9 = arith.constant 0 : index
    %10 = vector.load %arg6[%c0_8, %c0_9] : memref<128x128xbf16, #tpu.memory_space<vmem>>, vector<128x128xbf16>
    %cst_10 = arith.constant dense<0.000000e+00> : vector<160x128xf32>
    %11 = tpu.matmul %9, %10, %cst_10 {dimension_numbers = #tpu.dot_dimension_numbers<[1], [0], [0], [1], [0, 0, 1, 1], [], []>} : vector<160x128xbf16>, vector<128x128xbf16>, vector<160x128xf32> -> vector<160x128xf32>
    %c0_11 = arith.constant 0 : index
    %c0_12 = arith.constant 0 : index
    %12 = vector.load %arg7[%c0_11, %c0_12] : memref<1x128xf32, #tpu.memory_space<vmem>>, vector<1x128xf32>
    %13 = vector.broadcast %12 : vector<1x128xf32> to vector<160x128xf32>
    %14 = arith.addf %11, %13 : vector<160x128xf32>
    %cst_13 = arith.constant 0.000000e+00 : f32
    %15 = vector.broadcast %cst_13 : f32 to vector<160x128xf32>
    %16 = arith.maximumf %14, %15 : vector<160x128xf32>
    %17 = arith.truncf %16 : vector<160x128xf32> to vector<160x128xbf16>
    %c0_14 = arith.constant 0 : index
    %c0_15 = arith.constant 0 : index
    %18 = vector.load %arg8[%c0_14, %c0_15] : memref<128x36xbf16, #tpu.memory_space<vmem>>, vector<128x36xbf16>
    %cst_16 = arith.constant dense<0.000000e+00> : vector<160x36xf32>
    %19 = tpu.matmul %17, %18, %cst_16 {dimension_numbers = #tpu.dot_dimension_numbers<[1], [0], [0], [1], [0, 0, 1, 1], [], []>} : vector<160x128xbf16>, vector<128x36xbf16>, vector<160x36xf32> -> vector<160x36xf32>
    %20 = vector.shape_cast %19 : vector<160x36xf32> to vector<10x16x36xf32>
    %21 = tpu.iota {dimensions = array<i32: 0>} : vector<10x1x1xi32>
    %c0_i32 = arith.constant 0 : i32
    %22 = vector.broadcast %c0_i32 : i32 to vector<10x1x1xi32>
    %23 = arith.cmpi ne, %21, %22 : vector<10x1x1xi32>
    %c0_i32_17 = arith.constant 0 : i32
    %24 = arith.cmpi ne, %arg1, %c0_i32_17 : i32
    %25 = vector.broadcast %24 : i1 to vector<10x1x1xi1>
    %26 = arith.ori %23, %25 : vector<10x1x1xi1>
    %c9_i32 = arith.constant 9 : i32
    %27 = vector.broadcast %c9_i32 : i32 to vector<10x1x1xi32>
    %28 = arith.cmpi ne, %21, %27 : vector<10x1x1xi32>
    %c1_i32 = arith.constant 1 : i32
    %29 = arith.cmpi ne, %arg1, %c1_i32 : i32
    %30 = vector.broadcast %29 : i1 to vector<10x1x1xi1>
    %31 = arith.ori %28, %30 : vector<10x1x1xi1>
    %32 = arith.andi %26, %31 : vector<10x1x1xi1>
    %cst_18 = arith.constant 0.000000e+00 : f32
    %33 = vector.shape_cast %32 : vector<10x1x1xi1> to vector<10x1x1xi1>
    %34 = vector.broadcast %33 : vector<10x1x1xi1> to vector<10x16x36xi1>
    %35 = vector.broadcast %cst_18 : f32 to vector<10x16x36xf32>
    %36 = arith.select %34, %20, %35 : vector<10x16x36xi1>, vector<10x16x36xf32>
    %cst_19 = arith.constant 0.000000e+00 : f32
    %37 = vector.broadcast %cst_19 : f32 to vector<8x1x4xf32>
    %cst_20 = arith.constant 0.000000e+00 : f32
    %38 = vector.broadcast %cst_20 : f32 to vector<8x16x4xf32>
    %39 = vector.extract_strided_slice %36 {offsets = [0, 0, 0], sizes = [8, 16, 4], strides = [1, 1, 1]} : vector<10x16x36xf32> to vector<8x16x4xf32>
    %40 = vector.extract_strided_slice %39 {offsets = [0, 0, 0], sizes = [8, 15, 4], strides = [1, 1, 1]} : vector<8x16x4xf32> to vector<8x15x4xf32>
    %41 = tpu.concatenate %37, %40 in 1 : vector<8x1x4xf32>, vector<8x15x4xf32> -> vector<8x16x4xf32>
    %42 = arith.addf %38, %41 : vector<8x16x4xf32>
    %43 = vector.extract_strided_slice %36 {offsets = [0, 0, 4], sizes = [8, 16, 4], strides = [1, 1, 1]} : vector<10x16x36xf32> to vector<8x16x4xf32>
    %44 = arith.addf %42, %43 : vector<8x16x4xf32>
    %45 = vector.extract_strided_slice %36 {offsets = [0, 0, 8], sizes = [8, 16, 4], strides = [1, 1, 1]} : vector<10x16x36xf32> to vector<8x16x4xf32>
    %46 = vector.extract_strided_slice %45 {offsets = [0, 1, 0], sizes = [8, 15, 4], strides = [1, 1, 1]} : vector<8x16x4xf32> to vector<8x15x4xf32>
    %47 = tpu.concatenate %46, %37 in 1 : vector<8x15x4xf32>, vector<8x1x4xf32> -> vector<8x16x4xf32>
    %48 = arith.addf %44, %47 : vector<8x16x4xf32>
    %49 = vector.extract_strided_slice %36 {offsets = [1, 0, 12], sizes = [8, 16, 4], strides = [1, 1, 1]} : vector<10x16x36xf32> to vector<8x16x4xf32>
    %50 = vector.extract_strided_slice %49 {offsets = [0, 0, 0], sizes = [8, 15, 4], strides = [1, 1, 1]} : vector<8x16x4xf32> to vector<8x15x4xf32>
    %51 = tpu.concatenate %37, %50 in 1 : vector<8x1x4xf32>, vector<8x15x4xf32> -> vector<8x16x4xf32>
    %52 = arith.addf %48, %51 : vector<8x16x4xf32>
    %53 = vector.extract_strided_slice %36 {offsets = [1, 0, 16], sizes = [8, 16, 4], strides = [1, 1, 1]} : vector<10x16x36xf32> to vector<8x16x4xf32>
    %54 = arith.addf %52, %53 : vector<8x16x4xf32>
    %55 = vector.extract_strided_slice %36 {offsets = [1, 0, 20], sizes = [8, 16, 4], strides = [1, 1, 1]} : vector<10x16x36xf32> to vector<8x16x4xf32>
    %56 = vector.extract_strided_slice %55 {offsets = [0, 1, 0], sizes = [8, 15, 4], strides = [1, 1, 1]} : vector<8x16x4xf32> to vector<8x15x4xf32>
    %57 = tpu.concatenate %56, %37 in 1 : vector<8x15x4xf32>, vector<8x1x4xf32> -> vector<8x16x4xf32>
    %58 = arith.addf %54, %57 : vector<8x16x4xf32>
    %59 = vector.extract_strided_slice %36 {offsets = [2, 0, 24], sizes = [8, 16, 4], strides = [1, 1, 1]} : vector<10x16x36xf32> to vector<8x16x4xf32>
    %60 = vector.extract_strided_slice %59 {offsets = [0, 0, 0], sizes = [8, 15, 4], strides = [1, 1, 1]} : vector<8x16x4xf32> to vector<8x15x4xf32>
    %61 = tpu.concatenate %37, %60 in 1 : vector<8x1x4xf32>, vector<8x15x4xf32> -> vector<8x16x4xf32>
    %62 = arith.addf %58, %61 : vector<8x16x4xf32>
    %63 = vector.extract_strided_slice %36 {offsets = [2, 0, 28], sizes = [8, 16, 4], strides = [1, 1, 1]} : vector<10x16x36xf32> to vector<8x16x4xf32>
    %64 = arith.addf %62, %63 : vector<8x16x4xf32>
    %65 = vector.extract_strided_slice %36 {offsets = [2, 0, 32], sizes = [8, 16, 4], strides = [1, 1, 1]} : vector<10x16x36xf32> to vector<8x16x4xf32>
    %66 = vector.extract_strided_slice %65 {offsets = [0, 1, 0], sizes = [8, 15, 4], strides = [1, 1, 1]} : vector<8x16x4xf32> to vector<8x15x4xf32>
    %67 = tpu.concatenate %66, %37 in 1 : vector<8x15x4xf32>, vector<8x1x4xf32> -> vector<8x16x4xf32>
    %68 = arith.addf %64, %67 : vector<8x16x4xf32>
    %c0_21 = arith.constant 0 : index
    %c0_22 = arith.constant 0 : index
    %69 = vector.load %arg9[%c0_21, %c0_22] : memref<1x4xf32, #tpu.memory_space<vmem>>, vector<1x4xf32>
    %70 = vector.shape_cast %69 : vector<1x4xf32> to vector<1x1x4xf32>
    %71 = vector.broadcast %70 : vector<1x1x4xf32> to vector<8x16x4xf32>
    %72 = arith.addf %68, %71 : vector<8x16x4xf32>
    %73 = vector.extract_strided_slice %72 {offsets = [0, 0, 0], sizes = [8, 16, 2], strides = [1, 1, 1]} : vector<8x16x4xf32> to vector<8x16x2xf32>
    %74 = vector.extract_strided_slice %72 {offsets = [0, 0, 2], sizes = [8, 16, 2], strides = [1, 1, 1]} : vector<8x16x4xf32> to vector<8x16x2xf32>
    %75 = arith.negf %74 : vector<8x16x2xf32>
    %76 = math.exp %75 : vector<8x16x2xf32>
    %cst_23 = arith.constant 1.000000e+00 : f32
    %77 = vector.broadcast %cst_23 : f32 to vector<8x16x2xf32>
    %78 = arith.addf %77, %76 : vector<8x16x2xf32>
    %79 = arith.divf %77, %78 : vector<8x16x2xf32>
    %c0_24 = arith.constant 0 : index
    %c0_25 = arith.constant 0 : index
    %c0_26 = arith.constant 0 : index
    %80 = vector.load %arg3[%c0_24, %c0_25, %c0_26] : memref<1x8x32xf32, #tpu.memory_space<vmem>>, vector<1x8x32xf32>
    %81 = vector.shape_cast %80 : vector<1x8x32xf32> to vector<8x32xf32>
    %82 = vector.shape_cast %81 : vector<8x32xf32> to vector<8x16x2xf32>
    %83 = arith.addf %82, %73 : vector<8x16x2xf32>
    %84 = arith.mulf %83, %79 : vector<8x16x2xf32>
    %85 = vector.shape_cast %84 : vector<8x16x2xf32> to vector<8x32xf32>
    %c0_27 = arith.constant 0 : index
    %c0_28 = arith.constant 0 : index
    %c0_29 = arith.constant 0 : index
    %86 = vector.load %arg10[%c0_27, %c0_28, %c0_29] : memref<1x8x32xf32, #tpu.memory_space<vmem>>, vector<1x8x32xf32>
    %87 = vector.shape_cast %86 : vector<1x8x32xf32> to vector<8x32xf32>
    %88 = vector.shape_cast %85 : vector<8x32xf32> to vector<1x8x32xf32>
    tpu.vector_store %arg10[%c0_27, %c0_28, %c0_29], %88 {strides = array<i32>} : memref<1x8x32xf32, #tpu.memory_space<vmem>>, vector<1x8x32xf32>,
    %89 = math.log %79 : vector<8x16x2xf32>
    %cst_30 = arith.constant dense<0.000000e+00> : vector<8x16xf32>
    %90 = vector.multi_reduction <add>, %89, %cst_30 [2] : vector<8x16x2xf32> to vector<8x16xf32>
    %cst_31 = arith.constant dense<0.000000e+00> : vector<8xf32>
    %91 = vector.multi_reduction <add>, %90, %cst_31 [1] : vector<8x16xf32> to vector<8xf32>
    %92 = vector.shape_cast %91 : vector<8xf32> to vector<8x1xf32>
    %cst_32 = arith.constant dense<0.000000e+00> : vector<1xf32>
    %93 = vector.multi_reduction <add>, %92, %cst_32 [0] : vector<8x1xf32> to vector<1xf32>
    %94 = vector.shape_cast %93 : vector<1xf32> to vector<1x1xf32>
    %c0_33 = arith.constant 0 : index
    %c0_34 = arith.constant 0 : index
    %c0_35 = arith.constant 0 : index
    %c0_36 = arith.constant 0 : index
    %95 = vector.load %arg11[%c0_33, %c0_34, %c0_35, %c0_36] : memref<1x1x1x1xf32, #tpu.memory_space<vmem>>, vector<1x1x1x1xf32>
    %96 = vector.shape_cast %95 : vector<1x1x1x1xf32> to vector<1x1xf32>
    %97 = vector.shape_cast %94 : vector<1x1xf32> to vector<1x1x1x1xf32>
    tpu.vector_store %arg11[%c0_33, %c0_34, %c0_35, %c0_36], %97 {strides = array<i32>} : memref<1x1x1x1xf32, #tpu.memory_space<vmem>>, vector<1x1x1x1xf32>,
    return
  }
  func.func @transform_0(%arg0: i32, %arg1: i32) -> (i32, i32, i32, i32) {
    %c0_i32 = arith.constant 0 : i32
    %c0_i32_0 = arith.constant 0 : i32
    %c0_i32_1 = arith.constant 0 : i32
    return %arg0, %arg1, %c0_i32, %c0_i32_0 : i32, i32, i32, i32
  }
  func.func @transform_1(%arg0: i32, %arg1: i32) -> (i32, i32, i32) {
    %c0_i32 = arith.constant 0 : i32
    %c0_i32_0 = arith.constant 0 : i32
    return %arg0, %arg1, %c0_i32 : i32, i32, i32
  }
  func.func @transform_2(%arg0: i32, %arg1: i32) -> (i32, i32) {
    %c0_i32 = arith.constant 0 : i32
    %c0_i32_0 = arith.constant 0 : i32
    %c0_i32_1 = arith.constant 0 : i32
    return %c0_i32, %c0_i32_0 : i32, i32
  }
  func.func @transform_3(%arg0: i32, %arg1: i32) -> (i32, i32) {
    %c0_i32 = arith.constant 0 : i32
    %c0_i32_0 = arith.constant 0 : i32
    %c0_i32_1 = arith.constant 0 : i32
    return %c0_i32, %c0_i32_0 : i32, i32
  }
  func.func @transform_4(%arg0: i32, %arg1: i32) -> (i32, i32) {
    %c0_i32 = arith.constant 0 : i32
    %c0_i32_0 = arith.constant 0 : i32
    %c0_i32_1 = arith.constant 0 : i32
    return %c0_i32, %c0_i32_0 : i32, i32
  }
  func.func @transform_5(%arg0: i32, %arg1: i32) -> (i32, i32) {
    %c0_i32 = arith.constant 0 : i32
    %c0_i32_0 = arith.constant 0 : i32
    %c0_i32_1 = arith.constant 0 : i32
    return %c0_i32, %c0_i32_0 : i32, i32
  }
  func.func @transform_6(%arg0: i32, %arg1: i32) -> (i32, i32) {
    %c0_i32 = arith.constant 0 : i32
    %c0_i32_0 = arith.constant 0 : i32
    %c0_i32_1 = arith.constant 0 : i32
    return %c0_i32, %c0_i32_0 : i32, i32
  }
  func.func @transform_7(%arg0: i32, %arg1: i32) -> (i32, i32) {
    %c0_i32 = arith.constant 0 : i32
    %c0_i32_0 = arith.constant 0 : i32
    %c0_i32_1 = arith.constant 0 : i32
    return %c0_i32, %c0_i32_0 : i32, i32
  }
  func.func @transform_8(%arg0: i32, %arg1: i32) -> (i32, i32, i32) {
    %c0_i32 = arith.constant 0 : i32
    %c0_i32_0 = arith.constant 0 : i32
    return %arg0, %arg1, %c0_i32 : i32, i32, i32
  }
  func.func @transform_9(%arg0: i32, %arg1: i32) -> (i32, i32, i32, i32) {
    %c0_i32 = arith.constant 0 : i32
    %c0_i32_0 = arith.constant 0 : i32
    %c0_i32_1 = arith.constant 0 : i32
    return %arg0, %arg1, %c0_i32, %c0_i32_0 : i32, i32, i32, i32
  }
}

</mosaic_0001>

<llo_original>
// kernel: tpu_custom_call.1
$region0: #{tpu_custom_call.1}
  #allocation0 [shape = 'u32[]', space=smem, size = 0x4, offset = 0x4, fixed_abs, tag = 'smem constant byte address 0x4 - core index']
  #allocation1 [shape = 'u32[144,128]{1,0:T(1,128)}', space=vmem, size = 0x12000, scoped, tag = 'internal scratch']
  %s0 = inlined_call_operand.vmem [shape: bf16[2,2,160,54], index: 0, kind: input, shape index: {}]
  %s1 = inlined_call_operand.vmem [shape: f32[2,16,32], index: 1, kind: input, shape index: {}]
  %s2 = inlined_call_operand.vmem [shape: bf16[54,128], index: 2, kind: input, shape index: {}]
  %s3 = inlined_call_operand.vmem [shape: f32[1,128], index: 3, kind: input, shape index: {}]
  %s4 = inlined_call_operand.vmem [shape: bf16[128,128], index: 4, kind: input, shape index: {}]
  %s5 = inlined_call_operand.vmem [shape: f32[1,128], index: 5, kind: input, shape index: {}]
  %s6 = inlined_call_operand.vmem [shape: bf16[128,36], index: 6, kind: input, shape index: {}]
  %s7 = inlined_call_operand.vmem [shape: f32[1,4], index: 7, kind: input, shape index: {}]
  %s8 = inlined_call_operand.hbm [shape: f32[2,16,32], index: 8, kind: output, shape index: {0}]
  %s9 = inlined_call_operand.vmem [shape: f32[2,2,1,1], index: 9, kind: output, shape index: {1}]
  %10 = xla_tuple %s8, %s9
  %s11 = sld [smem:[#allocation0]]
  $region73: #{tpu_custom_call.1} parent=0
    _
  %s13 = ssub.s32 1, %s11
  %s14 = scalar_select 0, %s13, %s11
  $region1: #{tpu_custom_call.1} parent=0
    #allocation2 [shape = 'u8[8192]{0}', space=vmem, size = 0x2000, scoped, tag = 'output window, operand 0']
    #allocation3 [shape = 's32[2]{0}', space=sflag, size = 0x8, scoped, tag = 'scoped memory for tpu_custom_call.1']
    %15 = vsyncpa [#allocation3], 0
    %s16 = scalar_lea.sflag [#allocation3], 1
    %17 = vsyncpa %s16, 0
    loop: start=0, step=1, limit=6
    $region2: #{tpu_custom_call.1} parent=1 // loop_pre_header
      _
    $region3: #{tpu_custom_call.1} parent=1 // loop_header
      %s19 = sphi 0, %s23
      %p20 = scmp.ge.s32.totalorder %s19, 6
      %s26 = sphi 0, %s38
      %s27 = sphi 0, %s34
      %s28 = sphi 0, %s26
      %s29 = sphi 0, %s27
      %s30 = sphi 0, %s28
      %s31 = sphi 0, %s29
      %s43 = sphi 0, %s45
      %s46 = sphi 0, %s43
      %s47 = sphi 0, %s46
      %s63 = sphi 0, %s47
      %s71 = sphi 0, %s73
      %s74 = sphi 0, %s71
      %s75 = sphi 0, %s74
      %s91 = sphi 0, %s75
      %s95 = sphi 0, %s95
      %s97 = sphi 0, %s95
      %s98 = sphi 0, %s97
      %s112 = sphi 0, %s98
      %s116 = sphi 0, %s116
      %s118 = sphi 0, %s116
      %s119 = sphi 0, %s118
      %s133 = sphi 0, %s119
      %s137 = sphi 0, %s137
      %s139 = sphi 0, %s137
      %s140 = sphi 0, %s139
      %s154 = sphi 0, %s140
      %s158 = sphi 0, %s158
      %s160 = sphi 0, %s158
      %s161 = sphi 0, %s160
      %s175 = sphi 0, %s161
      %s179 = sphi 0, %s179
      %s181 = sphi 0, %s179
      %s182 = sphi 0, %s181
      %s196 = sphi 0, %s182
      %s200 = sphi 0, %s200
      %s202 = sphi 0, %s200
      %s203 = sphi 0, %s202
      %s217 = sphi 0, %s203
      %s225 = sphi 0, %s227
      %s228 = sphi 0, %s225
      %s229 = sphi 0, %s228
      %s245 = sphi 0, %s229
      %s253 = sphi 0, %s255
      %s256 = sphi 0, %s253
      %s257 = sphi 0, %s256
      %s273 = sphi 0, %s257
    $region4: #{tpu_custom_call.1} parent=1 // loop_header_branch
      %22 = sbr.rel (%p20) target = $region8
    $region5: #{tpu_custom_call.1} parent=1 // loop_body
      %s24 = ssub.s32 %s19, 1
      %s25 = ssub.s32 %s19, 2
      %s32 = sadd.s32 1, %s27
      %p33 = scmp.ge.s32.totalorder %s32, 2
      %s34 = scalar_select %p33, 0, %s32
      %s35 = sadd.s32 1, %s26
      %s36 = scalar_select %p33, %s35, %s26
      %p37 = scmp.ge.s32.totalorder %s36, 2
      %s38 = scalar_select %p37, 0, %s36
      %s39 = ssub.s32 %s26, %s38
      %s40 = ssub.s32 %s27, %s34
      %s41 = sor.u32 %s39, %s40
      %p42 = scmp.eq.s32.totalorder %s41, 0
      %s44 = sadd.s32 %s43, 1
      %s45 = scalar_select %p42, %s43, %s44
      %p48 = pneg %p42
      %p49 = scmp.eq.s32.totalorder %s19, 3
      %p50 = por %p48, %p49
      %p51 = scmp.ne.s32.totalorder %s43, %s46
      %p52 = scmp.eq.s32.totalorder %s19, 0
      %p53 = por %p51, %p52
      %p54 = scmp.ne.s32.totalorder %s43, %s46
      %p55 = scmp.eq.s32.totalorder %s24, 3
      %p56 = por %p54, %p55
      %p57 = scmp.ne.s32.totalorder %s46, %s47
      %p58 = scmp.eq.s32.totalorder %s24, 0
      %p59 = por %p57, %p58
      %p60 = scmp.ne.s32.totalorder %s46, %s47
      %p61 = scmp.eq.s32.totalorder %s25, 3
      %p62 = por %p60, %p61
      %p64 = scmp.ne.s32.totalorder %s47, %s63
      %p65 = scmp.eq.s32.totalorder %s25, 0
      %p66 = por %p64, %p65
      %s67 = ssub.s32 %s26, %s38
      %s68 = ssub.s32 %s27, %s34
      %s69 = sor.u32 %s67, %s68
      %p70 = scmp.eq.s32.totalorder %s69, 0
      %s72 = sadd.s32 %s71, 1
      %s73 = scalar_select %p70, %s71, %s72
      %p76 = pneg %p70
      %p77 = scmp.eq.s32.totalorder %s19, 3
      %p78 = por %p76, %p77
      %p79 = scmp.ne.s32.totalorder %s71, %s74
      %p80 = scmp.eq.s32.totalorder %s19, 0
      %p81 = por %p79, %p80
      %p82 = scmp.ne.s32.totalorder %s71, %s74
      %p83 = scmp.eq.s32.totalorder %s24, 3
      %p84 = por %p82, %p83
      %p85 = scmp.ne.s32.totalorder %s74, %s75
      %p86 = scmp.eq.s32.totalorder %s24, 0
      %p87 = por %p85, %p86
      %p88 = scmp.ne.s32.totalorder %s74, %s75
      %p89 = scmp.eq.s32.totalorder %s25, 3
      %p90 = por %p88, %p89
      %p92 = scmp.ne.s32.totalorder %s75, %s91
      %p93 = scmp.eq.s32.totalorder %s25, 0
      %p94 = por %p92, %p93
      %s96 = sadd.s32 %s95, 1
      %p99 = scmp.eq.s32.totalorder %s19, 3
      %p100 = scmp.ne.s32.totalorder %s95, %s97
      %p101 = scmp.eq.s32.totalorder %s19, 0
      %p102 = por %p100, %p101
      %p103 = scmp.ne.s32.totalorder %s95, %s97
      %p104 = scmp.eq.s32.totalorder %s24, 3
      %p105 = por %p103, %p104
      %p106 = scmp.ne.s32.totalorder %s97, %s98
      %p107 = scmp.eq.s32.totalorder %s24, 0
      %p108 = por %p106, %p107
      %p109 = scmp.ne.s32.totalorder %s97, %s98
      %p110 = scmp.eq.s32.totalorder %s25, 3
      %p111 = por %p109, %p110
      %p113 = scmp.ne.s32.totalorder %s98, %s112
      %p114 = scmp.eq.s32.totalorder %s25, 0
      %p115 = por %p113, %p114
      %s117 = sadd.s32 %s116, 1
      %p120 = scmp.eq.s32.totalorder %s19, 3
      %p121 = scmp.ne.s32.totalorder %s116, %s118
      %p122 = scmp.eq.s32.totalorder %s19, 0
      %p123 = por %p121, %p122
      %p124 = scmp.ne.s32.totalorder %s116, %s118
      %p125 = scmp.eq.s32.totalorder %s24, 3
      %p126 = por %p124, %p125
      %p127 = scmp.ne.s32.totalorder %s118, %s119
      %p128 = scmp.eq.s32.totalorder %s24, 0
      %p129 = por %p127, %p128
      %p130 = scmp.ne.s32.totalorder %s118, %s119
      %p131 = scmp.eq.s32.totalorder %s25, 3
      %p132 = por %p130, %p131
      %p134 = scmp.ne.s32.totalorder %s119, %s133
      %p135 = scmp.eq.s32.totalorder %s25, 0
      %p136 = por %p134, %p135
      %s138 = sadd.s32 %s137, 1
      %p141 = scmp.eq.s32.totalorder %s19, 3
      %p142 = scmp.ne.s32.totalorder %s137, %s139
      %p143 = scmp.eq.s32.totalorder %s19, 0
      %p144 = por %p142, %p143
      %p145 = scmp.ne.s32.totalorder %s137, %s139
      %p146 = scmp.eq.s32.totalorder %s24, 3
      %p147 = por %p145, %p146
      %p148 = scmp.ne.s32.totalorder %s139, %s140
      %p149 = scmp.eq.s32.totalorder %s24, 0
      %p150 = por %p148, %p149
      %p151 = scmp.ne.s32.totalorder %s139, %s140
      %p152 = scmp.eq.s32.totalorder %s25, 3
      %p153 = por %p151, %p152
      %p155 = scmp.ne.s32.totalorder %s140, %s154
      %p156 = scmp.eq.s32.totalorder %s25, 0
      %p157 = por %p155, %p156
      %s159 = sadd.s32 %s158, 1
      %p162 = scmp.eq.s32.totalorder %s19, 3
      %p163 = scmp.ne.s32.totalorder %s158, %s160
      %p164 = scmp.eq.s32.totalorder %s19, 0
      %p165 = por %p163, %p164
      %p166 = scmp.ne.s32.totalorder %s158, %s160
      %p167 = scmp.eq.s32.totalorder %s24, 3
      %p168 = por %p166, %p167
      %p169 = scmp.ne.s32.totalorder %s160, %s161
      %p170 = scmp.eq.s32.totalorder %s24, 0
      %p171 = por %p169, %p170
      %p172 = scmp.ne.s32.totalorder %s160, %s161
      %p173 = scmp.eq.s32.totalorder %s25, 3
      %p174 = por %p172, %p173
      %p176 = scmp.ne.s32.totalorder %s161, %s175
      %p177 = scmp.eq.s32.totalorder %s25, 0
      %p178 = por %p176, %p177
      %s180 = sadd.s32 %s179, 1
      %p183 = scmp.eq.s32.totalorder %s19, 3
      %p184 = scmp.ne.s32.totalorder %s179, %s181
      %p185 = scmp.eq.s32.totalorder %s19, 0
      %p186 = por %p184, %p185
      %p187 = scmp.ne.s32.totalorder %s179, %s181
      %p188 = scmp.eq.s32.totalorder %s24, 3
      %p189 = por %p187, %p188
      %p190 = scmp.ne.s32.totalorder %s181, %s182
      %p191 = scmp.eq.s32.totalorder %s24, 0
      %p192 = por %p190, %p191
      %p193 = scmp.ne.s32.totalorder %s181, %s182
      %p194 = scmp.eq.s32.totalorder %s25, 3
      %p195 = por %p193, %p194
      %p197 = scmp.ne.s32.totalorder %s182, %s196
      %p198 = scmp.eq.s32.totalorder %s25, 0
      %p199 = por %p197, %p198
      %s201 = sadd.s32 %s200, 1
      %p204 = scmp.eq.s32.totalorder %s19, 3
      %p205 = scmp.ne.s32.totalorder %s200, %s202
      %p206 = scmp.eq.s32.totalorder %s19, 0
      %p207 = por %p205, %p206
      %p208 = scmp.ne.s32.totalorder %s200, %s202
      %p209 = scmp.eq.s32.totalorder %s24, 3
      %p210 = por %p208, %p209
      %p211 = scmp.ne.s32.totalorder %s202, %s203
      %p212 = scmp.eq.s32.totalorder %s24, 0
      %p213 = por %p211, %p212
      %p214 = scmp.ne.s32.totalorder %s202, %s203
      %p215 = scmp.eq.s32.totalorder %s25, 3
      %p216 = por %p214, %p215
      %p218 = scmp.ne.s32.totalorder %s203, %s217
      %p219 = scmp.eq.s32.totalorder %s25, 0
      %p220 = por %p218, %p219
      %s221 = ssub.s32 %s26, %s38
      %s222 = ssub.s32 %s27, %s34
      %s223 = sor.u32 %s221, %s222
      %p224 = scmp.eq.s32.totalorder %s223, 0
      %s226 = sadd.s32 %s225, 1
      %s227 = scalar_select %p224, %s225, %s226
      %p230 = pneg %p224
      %p231 = scmp.eq.s32.totalorder %s19, 3
      %p232 = por %p230, %p231
      %p233 = scmp.ne.s32.totalorder %s225, %s228
      %p234 = scmp.eq.s32.totalorder %s19, 0
      %p235 = por %p233, %p234
      %p236 = scmp.ne.s32.totalorder %s225, %s228
      %p237 = scmp.eq.s32.totalorder %s24, 3
      %p238 = por %p236, %p237
      %p239 = scmp.ne.s32.totalorder %s228, %s229
      %p240 = scmp.eq.s32.totalorder %s24, 0
      %p241 = por %p239, %p240
      %p242 = scmp.ne.s32.totalorder %s228, %s229
      %p243 = scmp.eq.s32.totalorder %s25, 3
      %p244 = por %p242, %p243
      %p246 = scmp.ne.s32.totalorder %s229, %s245
      %p247 = scmp.eq.s32.totalorder %s25, 0
      %p248 = por %p246, %p247
      %s249 = ssub.s32 %s26, %s38
      %s250 = ssub.s32 %s27, %s34
      %s251 = sor.u32 %s249, %s250
      %p252 = scmp.eq.s32.totalorder %s251, 0
      %s254 = sadd.s32 %s253, 1
      %s255 = scalar_select %p252, %s253, %s254
      %p258 = pneg %p252
      %p259 = scmp.eq.s32.totalorder %s19, 3
      %p260 = por %p258, %p259
      %p261 = scmp.ne.s32.totalorder %s253, %s256
      %p262 = scmp.eq.s32.totalorder %s19, 0
      %p263 = por %p261, %p262
      %p264 = scmp.ne.s32.totalorder %s253, %s256
      %p265 = scmp.eq.s32.totalorder %s24, 3
      %p266 = por %p264, %p265
      %p267 = scmp.ne.s32.totalorder %s256, %s257
      %p268 = scmp.eq.s32.totalorder %s24, 0
      %p269 = por %p267, %p268
      %p270 = scmp.ne.s32.totalorder %s256, %s257
      %p271 = scmp.eq.s32.totalorder %s25, 3
      %p272 = por %p270, %p271
      %p274 = scmp.ne.s32.totalorder %s257, %s273
      %p275 = scmp.eq.s32.totalorder %s25, 0
      %p276 = por %p274, %p275
      %p277 = scmp.le.s32.totalorder 1, %s19
      %p278 = scmp.lt.s32.totalorder %s19, 5
      %p279 = pnand %p277, %p278
      %p280 = pneg %p279
      // Predicated region
      $region9: #{tpu_custom_call.1} parent=5 // pred_check
        _
      $region10: #{tpu_custom_call.1} parent=5 // pred_check_branch
        %282 = sbr.rel (%p279) target = $region12
      $region11: #{tpu_custom_call.1} parent=5 // pred_region
        %s283 = ssub.s32 %s19, 1
        // Predicated region
        $region13: #{tpu_custom_call.1} parent=11 // pred_check
          %p284 = pneg %p108
        $region14: #{tpu_custom_call.1} parent=11 // pred_check_branch
          %286 = sbr.rel (%p284) target = $region16
        $region15: #{tpu_custom_call.1} parent=11 // pred_region
          _
        $region16: #{tpu_custom_call.1} parent=11 // pred_fallthru
          _
        // Predicated region
        $region17: #{tpu_custom_call.1} parent=11 // pred_check
          %p287 = pneg %p129
        $region18: #{tpu_custom_call.1} parent=11 // pred_check_branch
          %289 = sbr.rel (%p287) target = $region20
        $region19: #{tpu_custom_call.1} parent=11 // pred_region
          _
        $region20: #{tpu_custom_call.1} parent=11 // pred_fallthru
          _
        // Predicated region
        $region21: #{tpu_custom_call.1} parent=11 // pred_check
          %p290 = pneg %p150
        $region22: #{tpu_custom_call.1} parent=11 // pred_check_branch
          %292 = sbr.rel (%p290) target = $region24
        $region23: #{tpu_custom_call.1} parent=11 // pred_region
          _
        $region24: #{tpu_custom_call.1} parent=11 // pred_fallthru
          _
        // Predicated region
        $region25: #{tpu_custom_call.1} parent=11 // pred_check
          %p293 = pneg %p171
        $region26: #{tpu_custom_call.1} parent=11 // pred_check_branch
          %295 = sbr.rel (%p293) target = $region28
        $region27: #{tpu_custom_call.1} parent=11 // pred_region
          _
        $region28: #{tpu_custom_call.1} parent=11 // pred_fallthru
          _
        // Predicated region
        $region29: #{tpu_custom_call.1} parent=11 // pred_check
          %p296 = pneg %p192
        $region30: #{tpu_custom_call.1} parent=11 // pred_check_branch
          %298 = sbr.rel (%p296) target = $region32
        $region31: #{tpu_custom_call.1} parent=11 // pred_region
          _
        $region32: #{tpu_custom_call.1} parent=11 // pred_fallthru
          _
        // Predicated region
        $region33: #{tpu_custom_call.1} parent=11 // pred_check
          %p299 = pneg %p213
        $region34: #{tpu_custom_call.1} parent=11 // pred_check_branch
          %301 = sbr.rel (%p299) target = $region36
        $region35: #{tpu_custom_call.1} parent=11 // pred_region
          _
        $region36: #{tpu_custom_call.1} parent=11 // pred_fallthru
          _
      $region12: #{tpu_custom_call.1} parent=5 // pred_fallthru
        _
      %p302 = scmp.lt.s32.totalorder %s19, 4
      // Predicated region
      $region37: #{tpu_custom_call.1} parent=5 // pred_check
        %p303 = pneg %p302
      $region38: #{tpu_custom_call.1} parent=5 // pred_check_branch
        %305 = sbr.rel (%p303) target = $region40
      $region39: #{tpu_custom_call.1} parent=5 // pred_region
        // Predicated region
        $region41: #{tpu_custom_call.1} parent=39 // pred_check
          %p306 = pneg %p53
        $region42: #{tpu_custom_call.1} parent=39 // pred_check_branch
          %308 = sbr.rel (%p306) target = $region44
        $region43: #{tpu_custom_call.1} parent=39 // pred_region
          %p309 = scmp.lt.s32.totalorder %s26, 1
          %s310 = scalar_select %p309, %s26, 1
          %p311 = scmp.lt.s32.totalorder %s27, 1
          %s312 = scalar_select %p311, %s27, 1
          %s313 = smul.addr %s312, 20
          %s314 = smul.addr %s310, 40
          %s315 = sadd.s32 %s313, %s314
          %s316 = smul.addr %s315, 4
          %s317 = scalar_lea.vmem %s0, %s316
        $region44: #{tpu_custom_call.1} parent=39 // pred_fallthru
          _
        // Predicated region
        $region45: #{tpu_custom_call.1} parent=39 // pred_check
          %p318 = pneg %p81
        $region46: #{tpu_custom_call.1} parent=39 // pred_check_branch
          %320 = sbr.rel (%p318) target = $region48
        $region47: #{tpu_custom_call.1} parent=39 // pred_region
          %p321 = scmp.lt.s32.totalorder %s26, 1
          %s322 = scalar_select %p321, %s26, 1
          %p323 = scmp.lt.s32.totalorder %s27, 1
          %s324 = scalar_select %p323, %s27, 1
          %s325 = smul.addr %s322, 2
          %s326 = sadd.s32 %s324, %s325
          %s327 = smul.addr %s326, 8
          %s328 = scalar_lea.vmem %s1, %s327
        $region48: #{tpu_custom_call.1} parent=39 // pred_fallthru
          _
      $region40: #{tpu_custom_call.1} parent=5 // pred_fallthru
        _
      %p329 = scmp.le.s32.totalorder 1, %s19
      %p330 = scmp.lt.s32.totalorder %s19, 5
      %p331 = pnand %p329, %p330
      %p332 = pneg %p331
      // Predicated region
      $region49: #{tpu_custom_call.1} parent=5 // pred_check
        _
      $region50: #{tpu_custom_call.1} parent=5 // pred_check_branch
        %334 = sbr.rel (%p331) target = $region52
      $region51: #{tpu_custom_call.1} parent=5 // pred_region
        %s335 = ssub.s32 %s19, 1
        %p336 = scmp.lt.s32.totalorder %s28, 1
        %s337 = scalar_select %p336, %s28, 1
        %p338 = scmp.lt.s32.totalorder %s29, 1
        %s339 = scalar_select %p338, %s29, 1
        %s340 = smul.addr %s339, 20
        %s341 = smul.addr %s337, 40
        %s342 = sadd.s32 %s340, %s341
        %s343 = smul.addr %s342, 4
        %s344 = scalar_lea.vmem %s0, %s343
        %p345 = pneg %p59
        %p346 = pneg %p56
        %p347 = scmp.lt.s32.totalorder %s28, 1
        %s348 = scalar_select %p347, %s28, 1
        %p349 = scmp.lt.s32.totalorder %s29, 1
        %s350 = scalar_select %p349, %s29, 1
        %s351 = smul.addr %s348, 2
        %s352 = sadd.s32 %s350, %s351
        %s353 = smul.addr %s352, 8
        %s354 = scalar_lea.vmem %s1, %s353
        %p355 = pneg %p87
        %p356 = pneg %p84
        %p357 = pneg %p108
        %p358 = pneg %p105
        %p359 = pneg %p129
        %p360 = pneg %p126
        %p361 = pneg %p150
        %p362 = pneg %p147
        %p363 = pneg %p171
        %p364 = pneg %p168
        %p365 = pneg %p192
        %p366 = pneg %p189
        %p367 = pneg %p213
        %p368 = pneg %p210
        %p369 = pneg %p241
        %p370 = pneg %p238
        %s371 = sand.u32 %s228, 1
        %s372 = scalar_lea.sflag [#allocation3], %s371
        %s373 = sand.u32 %s228, 1
        %s374 = smul.addr %s373, 8
        %s375 = scalar_lea.vmem [#allocation2], %s374
        %p376 = pneg %p269
        %p377 = pneg %p266
        %p378 = scmp.lt.s32.totalorder %s28, 1
        %s379 = scalar_select %p378, %s28, 1
        %p380 = scmp.lt.s32.totalorder %s29, 1
        %s381 = scalar_select %p380, %s29, 1
        %s382 = smul.addr %s379, 2
        %s383 = sadd.s32 %s381, %s382
        %s384 = scalar_lea.vmem %s9, %s383
        %p385 = scmp.lt.s32.totalorder %s28, 1
        %s386 = scalar_select %p385, %s28, 1
        %p387 = scmp.lt.s32.totalorder %s29, 1
        %s388 = scalar_select %p387, %s29, 1
        %s389 = smul.addr %s388, 20
        %s390 = smul.addr %s386, 40
        %s391 = sadd.s32 %s389, %s390
        %s392 = smul.addr %s391, 4
        %s393 = scalar_lea.vmem %s0, %s392
        %p394 = scmp.lt.s32.totalorder %s28, 1
        %s395 = scalar_select %p394, %s28, 1
        %p396 = scmp.lt.s32.totalorder %s29, 1
        %s397 = scalar_select %p396, %s29, 1
        %s398 = smul.addr %s395, 2
        %s399 = sadd.s32 %s397, %s398
        %s400 = smul.addr %s399, 8
        %s401 = scalar_lea.vmem %s1, %s400
        %p402 = scmp.lt.s32.totalorder %s28, 1
        %s403 = scalar_select %p402, %s28, 1
        %p404 = scmp.lt.s32.totalorder %s29, 1
        %s405 = scalar_select %p404, %s29, 1
        %s406 = smul.addr %s403, 2
        %s407 = sadd.s32 %s405, %s406
        %s408 = scalar_lea.vmem %s9, %s407
        %v410 = vld [vmem:[%s393] sm:$0xf]
        %v411 = vld [vmem:[%s393 + $0x4] sm:$0xf]
        %v412 = vld [vmem:[%s393 + $0x8] sm:$0xf]
        %v413 = vld [vmem:[%s393 + $0xc] sm:$0xf]
        %v414 = vld [vmem:[%s393 + $0x10] sm:$0xf]
        %v415 = vld [vmem:[%s393 + $0x14] sm:$0xf]
        %v416 = vld [vmem:[%s393 + $0x18] sm:$0xf]
        %v417 = vld [vmem:[%s393 + $0x1c] sm:$0xf]
        %v418 = vld [vmem:[%s393 + $0x20] sm:$0xf]
        %v419 = vld [vmem:[%s393 + $0x24] sm:$0xf]
        %v420 = vld [vmem:[%s393 + $0x28] sm:$0xf]
        %v421 = vld [vmem:[%s393 + $0x2c] sm:$0xf]
        %v422 = vld [vmem:[%s393 + $0x30] sm:$0xf]
        %v423 = vld [vmem:[%s393 + $0x34] sm:$0xf]
        %v424 = vld [vmem:[%s393 + $0x38] sm:$0xf]
        %v425 = vld [vmem:[%s393 + $0x3c] sm:$0xf]
        %v426 = vld [vmem:[%s393 + $0x40] sm:$0xf]
        %v427 = vld [vmem:[%s393 + $0x44] sm:$0xf]
        %v428 = vld [vmem:[%s393 + $0x48] sm:$0xf]
        %v429 = vld [vmem:[%s393 + $0x4c] sm:$0xf]
        %v430 = vld [vmem:[%s2] sm:$0xf]
        %v431 = vld [vmem:[%s2 + $0x4] sm:$0xf]
        %v432 = vld [vmem:[%s2 + $0x8] sm:$0xf]
        %v433 = vld [vmem:[%s2 + $0xc] sm:$0xf]
        %v434 = vld [vmem:[%s2 + $0x10] sm:$0xf]
        %v435 = vld [vmem:[%s2 + $0x14] sm:$0xf]
        %v436 = vld [vmem:[%s2 + $0x18] sm:$0x7]
        %v437 = vld [vmem:[%s3] sm:$0x1]
        %v439 = vlaneseq
        %v440 = vshrl.u32 %v439, 7
        %v441 = vsub.s32 0, %v440
        %v442 = vrot.slane %v437, %v441
        %v464 = vunpack.c.l.b16 %v410
        %v465 = vunpack.c.l.b16 %v411
        %v466 = vunpack.c.l.b16 %v412
        %v467 = vunpack.c.l.b16 %v413
        %v468 = vunpack.c.l.b16 %v414
        %v469 = vunpack.c.l.b16 %v415
        %v470 = vunpack.c.l.b16 %v416
        %v471 = vunpack.c.l.b16 %v417
        %v472 = vunpack.c.l.b16 %v418
        %v473 = vunpack.c.l.b16 %v419
        %v474 = vunpack.c.l.b16 %v420
        %v475 = vunpack.c.l.b16 %v421
        %v476 = vunpack.c.l.b16 %v422
        %v477 = vunpack.c.l.b16 %v423
        %v478 = vunpack.c.l.b16 %v424
        %v479 = vunpack.c.l.b16 %v425
        %v480 = vunpack.c.l.b16 %v426
        %v481 = vunpack.c.l.b16 %v427
        %v482 = vunpack.c.l.b16 %v428
        %v483 = vunpack.c.l.b16 %v429
        %v484 = vpack.c.b16 %v465, %v464
        %v485 = vpack.c.b16 %v467, %v466
        %v486 = vpack.c.b16 %v469, %v468
        %v487 = vpack.c.b16 %v471, %v470
        %v488 = vpack.c.b16 %v473, %v472
        %v489 = vpack.c.b16 %v475, %v474
        %v490 = vpack.c.b16 %v477, %v476
        %v491 = vpack.c.b16 %v479, %v478
        %v492 = vpack.c.b16 %v481, %v480
        %v493 = vpack.c.b16 %v483, %v482
        %v501 = vunpack.c.l.b16 %v430
        %v502 = vunpack.c.l.b16 %v431
        %v503 = vunpack.c.l.b16 %v432
        %v504 = vunpack.c.l.b16 %v433
        %v505 = vunpack.c.l.b16 %v434
        %v506 = vunpack.c.l.b16 %v435
        %v507 = vunpack.c.l.b16 %v436
        %v508 = vpack.c.b16 %v502, %v501
        %v509 = vpack.c.b16 %v504, %v503
        %v510 = vpack.c.b16 %v506, %v505
        %v511 = vpack.c.b16 %v507, %v507
        %vm515 = vcmask 441344
        %v517 = vsel %vm515, %v484, 0
        %v520 = vsel %vm515, %v485, 0
        %v523 = vsel %vm515, %v486, 0
        %v526 = vsel %vm515, %v487, 0
        %v529 = vsel %vm515, %v488, 0
        %v532 = vsel %vm515, %v489, 0
        %v535 = vsel %vm515, %v490, 0
        %v538 = vsel %vm515, %v491, 0
        %v541 = vsel %vm515, %v492, 0
        %v544 = vsel %vm515, %v493, 0
        %vm546 = vcmask 1042432
        %v548 = vsel %vm546, %v511, 0
        %550 = vmatprep.subr.bf16.mxu0 0
        %551 = vmatpush1.bf16.msra.mxu0 %v508
        %552 = vmatprep.subr.bf16.mxu0 0
        %553 = vmatpush1.bf16.msra.mxu0 %v509
        %554 = vmatprep.subr.bf16.mxu0 0
        %555 = vmatpush1.bf16.msra.mxu0 %v510
        %556 = vmatprep.subr.bf16.mxu0 0
        %557 = vmatpush1.bf16.msra.mxu0 %v548
        %558 = vmatprep.subr.bf16.mxu0 0
        %559 = vmatpush1.bf16.msra.mxu0 0
        %560 = vmatprep.subr.bf16.mxu0 0
        %561 = vmatpush1.bf16.msra.mxu0 0
        %562 = vmatprep.subr.bf16.mxu0 0
        %563 = vmatpush1.bf16.msra.mxu0 0
        %564 = vmatprep.subr.bf16.mxu0 0
        %565 = vmatpush1.bf16.msra.mxu0 0
        %566 = vmatprep.subr.bf16.mxu0 0
        %567 = vmatpush1.bf16.msra.mxu0 0
        %568 = vmatprep.subr.bf16.mxu0 0
        %569 = vmatpush1.bf16.msra.mxu0 0
        %570 = vmatprep.subr.bf16.mxu0 0
        %571 = vmatpush1.bf16.msra.mxu0 0
        %572 = vmatprep.subr.bf16.mxu0 0
        %573 = vmatpush1.bf16.msra.mxu0 0
        %574 = vmatprep.subr.bf16.mxu0 0
        %575 = vmatpush1.bf16.msra.mxu0 0
        %576 = vmatprep.subr.bf16.mxu0 0
        %577 = vmatpush1.bf16.msra.mxu0 0
        %578 = vmatprep.subr.bf16.mxu0 0
        %579 = vmatpush1.bf16.msra.mxu0 0
        %580 = vmatprep.subr.bf16.mxu0 0
        %581 = vmatpush1.bf16.msra.mxu0 0
        %582 = vmatprep.mubr.bf16.mxu0 0
        %583 = vmatmul.mubr.bf16.gmra.mrb[0].mxu0 %v517
        %v584 = vpop.f32.mrb[0].mxu0
        %v585 = vadd.f32 %v442, %v584
        %v586 = vpop.f32.mrb[0].mxu0
        %v587 = vpop.f32.mrb[0].mxu0
        %v588 = vadd.f32 %v442, %v587
        %v589 = vpop.f32.mrb[0].mxu0
        %590 = vmatprep.mubr.bf16.mxu0 0
        %591 = vmatmul.mubr.bf16.gmra.mrb[0].mxu0 %v520
        %v592 = vpop.f32.mrb[0].mxu0
        %v593 = vadd.f32 %v442, %v592
        %v594 = vpop.f32.mrb[0].mxu0
        %v595 = vpop.f32.mrb[0].mxu0
        %v596 = vadd.f32 %v442, %v595
        %v597 = vpop.f32.mrb[0].mxu0
        %598 = vmatprep.mubr.bf16.mxu0 0
        %599 = vmatmul.mubr.bf16.gmra.mrb[0].mxu0 %v523
        %v600 = vpop.f32.mrb[0].mxu0
        %v601 = vadd.f32 %v442, %v600
        %v602 = vpop.f32.mrb[0].mxu0
        %v603 = vpop.f32.mrb[0].mxu0
        %v604 = vadd.f32 %v442, %v603
        %v605 = vpop.f32.mrb[0].mxu0
        %606 = vmatprep.mubr.bf16.mxu0 0
        %607 = vmatmul.mubr.bf16.gmra.mrb[0].mxu0 %v526
        %v608 = vpop.f32.mrb[0].mxu0
        %v609 = vadd.f32 %v442, %v608
        %v610 = vpop.f32.mrb[0].mxu0
        %v611 = vpop.f32.mrb[0].mxu0
        %v612 = vadd.f32 %v442, %v611
        %v613 = vpop.f32.mrb[0].mxu0
        %614 = vmatprep.mubr.bf16.mxu0 0
        %615 = vmatmul.mubr.bf16.gmra.mrb[0].mxu0 %v529
        %v616 = vpop.f32.mrb[0].mxu0
        %v617 = vadd.f32 %v442, %v616
        %v618 = vpop.f32.mrb[0].mxu0
        %v619 = vpop.f32.mrb[0].mxu0
        %v620 = vadd.f32 %v442, %v619
        %v621 = vpop.f32.mrb[0].mxu0
        %622 = vmatprep.mubr.bf16.mxu0 0
        %623 = vmatmul.mubr.bf16.gmra.mrb[0].mxu0 %v532
        %v624 = vpop.f32.mrb[0].mxu0
        %v625 = vadd.f32 %v442, %v624
        %v626 = vpop.f32.mrb[0].mxu0
        %v627 = vpop.f32.mrb[0].mxu0
        %v628 = vadd.f32 %v442, %v627
        %v629 = vpop.f32.mrb[0].mxu0
        %630 = vmatprep.mubr.bf16.mxu0 0
        %631 = vmatmul.mubr.bf16.gmra.mrb[0].mxu0 %v535
        %v632 = vpop.f32.mrb[0].mxu0
        %v633 = vadd.f32 %v442, %v632
        %v634 = vpop.f32.mrb[0].mxu0
        %v635 = vpop.f32.mrb[0].mxu0
        %v636 = vadd.f32 %v442, %v635
        %v637 = vpop.f32.mrb[0].mxu0
        %638 = vmatprep.mubr.bf16.mxu0 0
        %639 = vmatmul.mubr.bf16.gmra.mrb[0].mxu0 %v538
        %v640 = vpop.f32.mrb[0].mxu0
        %v641 = vadd.f32 %v442, %v640
        %v642 = vpop.f32.mrb[0].mxu0
        %v643 = vpop.f32.mrb[0].mxu0
        %v644 = vadd.f32 %v442, %v643
        %v645 = vpop.f32.mrb[0].mxu0
        %646 = vmatprep.mubr.bf16.mxu0 0
        %647 = vmatmul.mubr.bf16.gmra.mrb[0].mxu0 %v541
        %v648 = vpop.f32.mrb[0].mxu0
        %v649 = vadd.f32 %v442, %v648
        %v650 = vpop.f32.mrb[0].mxu0
        %v651 = vpop.f32.mrb[0].mxu0
        %v652 = vadd.f32 %v442, %v651
        %v653 = vpop.f32.mrb[0].mxu0
        %654 = vmatprep.mubr.bf16.mxu0 0
        %655 = vmatmul.mubr.bf16.gmra.mrb[0].mxu0 %v544
        %v656 = vpop.f32.mrb[0].mxu0
        %v657 = vadd.f32 %v442, %v656
        %v658 = vpop.f32.mrb[0].mxu0
        %v659 = vpop.f32.mrb[0].mxu0
        %v660 = vadd.f32 %v442, %v659
        %v661 = vpop.f32.mrb[0].mxu0
        %662 = vdwg.mxu0
        %v663 = vmax.f32 %v585, 0.0
        %v664 = vmax.f32 %v588, 0.0
        %v665 = vmax.f32 %v593, 0.0
        %v666 = vmax.f32 %v596, 0.0
        %v667 = vmax.f32 %v601, 0.0
        %v668 = vmax.f32 %v604, 0.0
        %v669 = vmax.f32 %v609, 0.0
        %v670 = vmax.f32 %v612, 0.0
        %v671 = vmax.f32 %v617, 0.0
        %v672 = vmax.f32 %v620, 0.0
        %v673 = vmax.f32 %v625, 0.0
        %v674 = vmax.f32 %v628, 0.0
        %v675 = vmax.f32 %v633, 0.0
        %v676 = vmax.f32 %v636, 0.0
        %v677 = vmax.f32 %v641, 0.0
        %v678 = vmax.f32 %v644, 0.0
        %v679 = vmax.f32 %v649, 0.0
        %v680 = vmax.f32 %v652, 0.0
        %v681 = vmax.f32 %v657, 0.0
        %v682 = vmax.f32 %v660, 0.0
        %v683 = vpack.c.bf16 %v664, %v663
        %v684 = vpack.c.bf16 %v666, %v665
        %v685 = vpack.c.bf16 %v668, %v667
        %v686 = vpack.c.bf16 %v670, %v669
        %v687 = vpack.c.bf16 %v672, %v671
        %v688 = vpack.c.bf16 %v674, %v673
        %v689 = vpack.c.bf16 %v676, %v675
        %v690 = vpack.c.bf16 %v678, %v677
        %v691 = vpack.c.bf16 %v680, %v679
        %v692 = vpack.c.bf16 %v682, %v681
        %v693 = vld [vmem:[%s4] sm:$0xf]
        %v694 = vld [vmem:[%s4 + $0x4] sm:$0xf]
        %v695 = vld [vmem:[%s4 + $0x8] sm:$0xf]
        %v696 = vld [vmem:[%s4 + $0xc] sm:$0xf]
        %v697 = vld [vmem:[%s4 + $0x10] sm:$0xf]
        %v698 = vld [vmem:[%s4 + $0x14] sm:$0xf]
        %v699 = vld [vmem:[%s4 + $0x18] sm:$0xf]
        %v700 = vld [vmem:[%s4 + $0x1c] sm:$0xf]
        %v701 = vld [vmem:[%s4 + $0x20] sm:$0xf]
        %v702 = vld [vmem:[%s4 + $0x24] sm:$0xf]
        %v703 = vld [vmem:[%s4 + $0x28] sm:$0xf]
        %v704 = vld [vmem:[%s4 + $0x2c] sm:$0xf]
        %v705 = vld [vmem:[%s4 + $0x30] sm:$0xf]
        %v706 = vld [vmem:[%s4 + $0x34] sm:$0xf]
        %v707 = vld [vmem:[%s4 + $0x38] sm:$0xf]
        %v708 = vld [vmem:[%s4 + $0x3c] sm:$0xf]
        %v709 = vld [vmem:[%s5] sm:$0x1]
        %v711 = vlaneseq
        %v712 = vshrl.u32 %v711, 7
        %v713 = vsub.s32 0, %v712
        %v714 = vrot.slane %v709, %v713
        %v732 = vunpack.c.l.b16 %v693
        %v733 = vunpack.c.l.b16 %v694
        %v734 = vunpack.c.l.b16 %v695
        %v735 = vunpack.c.l.b16 %v696
        %v736 = vunpack.c.l.b16 %v697
        %v737 = vunpack.c.l.b16 %v698
        %v738 = vunpack.c.l.b16 %v699
        %v739 = vunpack.c.l.b16 %v700
        %v740 = vunpack.c.l.b16 %v701
        %v741 = vunpack.c.l.b16 %v702
        %v742 = vunpack.c.l.b16 %v703
        %v743 = vunpack.c.l.b16 %v704
        %v744 = vunpack.c.l.b16 %v705
        %v745 = vunpack.c.l.b16 %v706
        %v746 = vunpack.c.l.b16 %v707
        %v747 = vunpack.c.l.b16 %v708
        %v748 = vpack.c.b16 %v733, %v732
        %v749 = vpack.c.b16 %v735, %v734
        %v750 = vpack.c.b16 %v737, %v736
        %v751 = vpack.c.b16 %v739, %v738
        %v752 = vpack.c.b16 %v741, %v740
        %v753 = vpack.c.b16 %v743, %v742
        %v754 = vpack.c.b16 %v745, %v744
        %v755 = vpack.c.b16 %v747, %v746
        %764 = vmatprep.subr.bf16.mxu0 0
        %765 = vmatpush1.bf16.msra.mxu0 %v748
        %766 = vmatprep.subr.bf16.mxu0 0
        %767 = vmatpush1.bf16.msra.mxu0 %v749
        %768 = vmatprep.subr.bf16.mxu0 0
        %769 = vmatpush1.bf16.msra.mxu0 %v750
        %770 = vmatprep.subr.bf16.mxu0 0
        %771 = vmatpush1.bf16.msra.mxu0 %v751
        %772 = vmatprep.subr.bf16.mxu0 0
        %773 = vmatpush1.bf16.msra.mxu0 %v752
        %774 = vmatprep.subr.bf16.mxu0 0
        %775 = vmatpush1.bf16.msra.mxu0 %v753
        %776 = vmatprep.subr.bf16.mxu0 0
        %777 = vmatpush1.bf16.msra.mxu0 %v754
        %778 = vmatprep.subr.bf16.mxu0 0
        %779 = vmatpush1.bf16.msra.mxu0 %v755
        %780 = vmatprep.subr.bf16.mxu0 0
        %781 = vmatpush1.bf16.msra.mxu0 0
        %782 = vmatprep.subr.bf16.mxu0 0
        %783 = vmatpush1.bf16.msra.mxu0 0
        %784 = vmatprep.subr.bf16.mxu0 0
        %785 = vmatpush1.bf16.msra.mxu0 0
        %786 = vmatprep.subr.bf16.mxu0 0
        %787 = vmatpush1.bf16.msra.mxu0 0
        %788 = vmatprep.subr.bf16.mxu0 0
        %789 = vmatpush1.bf16.msra.mxu0 0
        %790 = vmatprep.subr.bf16.mxu0 0
        %791 = vmatpush1.bf16.msra.mxu0 0
        %792 = vmatprep.subr.bf16.mxu0 0
        %793 = vmatpush1.bf16.msra.mxu0 0
        %794 = vmatprep.subr.bf16.mxu0 0
        %795 = vmatpush1.bf16.msra.mxu0 0
        %796 = vmatprep.mubr.bf16.mxu0 0
        %797 = vmatmul.mubr.bf16.gmra.mrb[0].mxu0 %v683
        %v798 = vpop.f32.mrb[0].mxu0
        %v799 = vadd.f32 %v714, %v798
        %v800 = vpop.f32.mrb[0].mxu0
        %v801 = vpop.f32.mrb[0].mxu0
        %v802 = vadd.f32 %v714, %v801
        %v803 = vpop.f32.mrb[0].mxu0
        %804 = vmatprep.mubr.bf16.mxu0 0
        %805 = vmatmul.mubr.bf16.gmra.mrb[0].mxu0 %v684
        %v806 = vpop.f32.mrb[0].mxu0
        %v807 = vadd.f32 %v714, %v806
        %v808 = vpop.f32.mrb[0].mxu0
        %v809 = vpop.f32.mrb[0].mxu0
        %v810 = vadd.f32 %v714, %v809
        %v811 = vpop.f32.mrb[0].mxu0
        %812 = vmatprep.mubr.bf16.mxu0 0
        %813 = vmatmul.mubr.bf16.gmra.mrb[0].mxu0 %v685
        %v814 = vpop.f32.mrb[0].mxu0
        %v815 = vadd.f32 %v714, %v814
        %v816 = vpop.f32.mrb[0].mxu0
        %v817 = vpop.f32.mrb[0].mxu0
        %v818 = vadd.f32 %v714, %v817
        %v819 = vpop.f32.mrb[0].mxu0
        %820 = vmatprep.mubr.bf16.mxu0 0
        %821 = vmatmul.mubr.bf16.gmra.mrb[0].mxu0 %v686
        %v822 = vpop.f32.mrb[0].mxu0
        %v823 = vadd.f32 %v714, %v822
        %v824 = vpop.f32.mrb[0].mxu0
        %v825 = vpop.f32.mrb[0].mxu0
        %v826 = vadd.f32 %v714, %v825
        %v827 = vpop.f32.mrb[0].mxu0
        %828 = vmatprep.mubr.bf16.mxu0 0
        %829 = vmatmul.mubr.bf16.gmra.mrb[0].mxu0 %v687
        %v830 = vpop.f32.mrb[0].mxu0
        %v831 = vadd.f32 %v714, %v830
        %v832 = vpop.f32.mrb[0].mxu0
        %v833 = vpop.f32.mrb[0].mxu0
        %v834 = vadd.f32 %v714, %v833
        %v835 = vpop.f32.mrb[0].mxu0
        %836 = vmatprep.mubr.bf16.mxu0 0
        %837 = vmatmul.mubr.bf16.gmra.mrb[0].mxu0 %v688
        %v838 = vpop.f32.mrb[0].mxu0
        %v839 = vadd.f32 %v714, %v838
        %v840 = vpop.f32.mrb[0].mxu0
        %v841 = vpop.f32.mrb[0].mxu0
        %v842 = vadd.f32 %v714, %v841
        %v843 = vpop.f32.mrb[0].mxu0
        %844 = vmatprep.mubr.bf16.mxu0 0
        %845 = vmatmul.mubr.bf16.gmra.mrb[0].mxu0 %v689
        %v846 = vpop.f32.mrb[0].mxu0
        %v847 = vadd.f32 %v714, %v846
        %v848 = vpop.f32.mrb[0].mxu0
        %v849 = vpop.f32.mrb[0].mxu0
        %v850 = vadd.f32 %v714, %v849
        %v851 = vpop.f32.mrb[0].mxu0
        %852 = vmatprep.mubr.bf16.mxu0 0
        %853 = vmatmul.mubr.bf16.gmra.mrb[0].mxu0 %v690
        %v854 = vpop.f32.mrb[0].mxu0
        %v855 = vadd.f32 %v714, %v854
        %v856 = vpop.f32.mrb[0].mxu0
        %v857 = vpop.f32.mrb[0].mxu0
        %v858 = vadd.f32 %v714, %v857
        %v859 = vpop.f32.mrb[0].mxu0
        %860 = vmatprep.mubr.bf16.mxu0 0
        %861 = vmatmul.mubr.bf16.gmra.mrb[0].mxu0 %v691
        %v862 = vpop.f32.mrb[0].mxu0
        %v863 = vadd.f32 %v714, %v862
        %v864 = vpop.f32.mrb[0].mxu0
        %v865 = vpop.f32.mrb[0].mxu0
        %v866 = vadd.f32 %v714, %v865
        %v867 = vpop.f32.mrb[0].mxu0
        %868 = vmatprep.mubr.bf16.mxu0 0
        %869 = vmatmul.mubr.bf16.gmra.mrb[0].mxu0 %v692
        %v870 = vpop.f32.mrb[0].mxu0
        %v871 = vadd.f32 %v714, %v870
        %v872 = vpop.f32.mrb[0].mxu0
        %v873 = vpop.f32.mrb[0].mxu0
        %v874 = vadd.f32 %v714, %v873
        %v875 = vpop.f32.mrb[0].mxu0
        %876 = vdwg.mxu0
        %v877 = vmax.f32 %v799, 0.0
        %v878 = vmax.f32 %v802, 0.0
        %v879 = vmax.f32 %v807, 0.0
        %v880 = vmax.f32 %v810, 0.0
        %v881 = vmax.f32 %v815, 0.0
        %v882 = vmax.f32 %v818, 0.0
        %v883 = vmax.f32 %v823, 0.0
        %v884 = vmax.f32 %v826, 0.0
        %v885 = vmax.f32 %v831, 0.0
        %v886 = vmax.f32 %v834, 0.0
        %v887 = vmax.f32 %v839, 0.0
        %v888 = vmax.f32 %v842, 0.0
        %v889 = vmax.f32 %v847, 0.0
        %v890 = vmax.f32 %v850, 0.0
        %v891 = vmax.f32 %v855, 0.0
        %v892 = vmax.f32 %v858, 0.0
        %v893 = vmax.f32 %v863, 0.0
        %v894 = vmax.f32 %v866, 0.0
        %v895 = vmax.f32 %v871, 0.0
        %v896 = vmax.f32 %v874, 0.0
        %v897 = vpack.c.bf16 %v878, %v877
        %v898 = vpack.c.bf16 %v880, %v879
        %v899 = vpack.c.bf16 %v882, %v881
        %v900 = vpack.c.bf16 %v884, %v883
        %v901 = vpack.c.bf16 %v886, %v885
        %v902 = vpack.c.bf16 %v888, %v887
        %v903 = vpack.c.bf16 %v890, %v889
        %v904 = vpack.c.bf16 %v892, %v891
        %v905 = vpack.c.bf16 %v894, %v893
        %v906 = vpack.c.bf16 %v896, %v895
        %v907 = vld [vmem:[%s6] sm:$0xf]
        %v908 = vld [vmem:[%s6 + $0x4] sm:$0xf]
        %v909 = vld [vmem:[%s6 + $0x8] sm:$0xf]
        %v910 = vld [vmem:[%s6 + $0xc] sm:$0xf]
        %v911 = vld [vmem:[%s6 + $0x10] sm:$0xf]
        %v912 = vld [vmem:[%s6 + $0x14] sm:$0xf]
        %v913 = vld [vmem:[%s6 + $0x18] sm:$0xf]
        %v914 = vld [vmem:[%s6 + $0x1c] sm:$0xf]
        %v915 = vld [vmem:[%s6 + $0x20] sm:$0xf]
        %v916 = vld [vmem:[%s6 + $0x24] sm:$0xf]
        %v917 = vld [vmem:[%s6 + $0x28] sm:$0xf]
        %v918 = vld [vmem:[%s6 + $0x2c] sm:$0xf]
        %v919 = vld [vmem:[%s6 + $0x30] sm:$0xf]
        %v920 = vld [vmem:[%s6 + $0x34] sm:$0xf]
        %v921 = vld [vmem:[%s6 + $0x38] sm:$0xf]
        %v922 = vld [vmem:[%s6 + $0x3c] sm:$0xf]
        %v939 = vunpack.c.l.b16 %v907
        %v940 = vunpack.c.l.b16 %v908
        %v941 = vunpack.c.l.b16 %v909
        %v942 = vunpack.c.l.b16 %v910
        %v943 = vunpack.c.l.b16 %v911
        %v944 = vunpack.c.l.b16 %v912
        %v945 = vunpack.c.l.b16 %v913
        %v946 = vunpack.c.l.b16 %v914
        %v947 = vunpack.c.l.b16 %v915
        %v948 = vunpack.c.l.b16 %v916
        %v949 = vunpack.c.l.b16 %v917
        %v950 = vunpack.c.l.b16 %v918
        %v951 = vunpack.c.l.b16 %v919
        %v952 = vunpack.c.l.b16 %v920
        %v953 = vunpack.c.l.b16 %v921
        %v954 = vunpack.c.l.b16 %v922
        %v955 = vpack.c.b16 %v940, %v939
        %v956 = vpack.c.b16 %v942, %v941
        %v957 = vpack.c.b16 %v944, %v943
        %v958 = vpack.c.b16 %v946, %v945
        %v959 = vpack.c.b16 %v948, %v947
        %v960 = vpack.c.b16 %v950, %v949
        %v961 = vpack.c.b16 %v952, %v951
        %v962 = vpack.c.b16 %v954, %v953
        %971 = vmatprep.subr.bf16.mxu0 0
        %972 = vmatpush1.bf16.msra.mxu0 %v955
        %973 = vmatprep.subr.bf16.mxu0 0
        %974 = vmatpush1.bf16.msra.mxu0 %v956
        %975 = vmatprep.subr.bf16.mxu0 0
        %976 = vmatpush1.bf16.msra.mxu0 %v957
        %977 = vmatprep.subr.bf16.mxu0 0
        %978 = vmatpush1.bf16.msra.mxu0 %v958
        %979 = vmatprep.subr.bf16.mxu0 0
        %980 = vmatpush1.bf16.msra.mxu0 %v959
        %981 = vmatprep.subr.bf16.mxu0 0
        %982 = vmatpush1.bf16.msra.mxu0 %v960
        %983 = vmatprep.subr.bf16.mxu0 0
        %984 = vmatpush1.bf16.msra.mxu0 %v961
        %985 = vmatprep.subr.bf16.mxu0 0
        %986 = vmatpush1.bf16.msra.mxu0 %v962
        %987 = vmatprep.subr.bf16.mxu0 0
        %988 = vmatpush1.bf16.msra.mxu0 0
        %989 = vmatprep.subr.bf16.mxu0 0
        %990 = vmatpush1.bf16.msra.mxu0 0
        %991 = vmatprep.subr.bf16.mxu0 0
        %992 = vmatpush1.bf16.msra.mxu0 0
        %993 = vmatprep.subr.bf16.mxu0 0
        %994 = vmatpush1.bf16.msra.mxu0 0
        %995 = vmatprep.subr.bf16.mxu0 0
        %996 = vmatpush1.bf16.msra.mxu0 0
        %997 = vmatprep.subr.bf16.mxu0 0
        %998 = vmatpush1.bf16.msra.mxu0 0
        %999 = vmatprep.subr.bf16.mxu0 0
        %1000 = vmatpush1.bf16.msra.mxu0 0
        %1001 = vmatprep.subr.bf16.mxu0 0
        %1002 = vmatpush1.bf16.msra.mxu0 0
        %1003 = vmatprep.mubr.bf16.mxu0 0
        %1004 = vmatmul.mubr.bf16.gmra.mrb[0].mxu0 %v897
        %v1005 = vpop.f32.mrb[0].mxu0
        %v1006 = vadd.f32 0.0, %v1005
        %v1007 = vpop.f32.mrb[0].mxu0
        %v1008 = vpop.f32.mrb[0].mxu0
        %v1009 = vadd.f32 0.0, %v1008
        %v1010 = vpop.f32.mrb[0].mxu0
        %1011 = vmatprep.mubr.bf16.mxu0 0
        %1012 = vmatmul.mubr.bf16.gmra.mrb[0].mxu0 %v898
        %v1013 = vpop.f32.mrb[0].mxu0
        %v1014 = vadd.f32 0.0, %v1013
        %v1015 = vpop.f32.mrb[0].mxu0
        %v1016 = vpop.f32.mrb[0].mxu0
        %v1017 = vadd.f32 0.0, %v1016
        %v1018 = vpop.f32.mrb[0].mxu0
        %1019 = vmatprep.mubr.bf16.mxu0 0
        %1020 = vmatmul.mubr.bf16.gmra.mrb[0].mxu0 %v899
        %v1021 = vpop.f32.mrb[0].mxu0
        %v1022 = vadd.f32 0.0, %v1021
        %v1023 = vpop.f32.mrb[0].mxu0
        %v1024 = vpop.f32.mrb[0].mxu0
        %v1025 = vadd.f32 0.0, %v1024
        %v1026 = vpop.f32.mrb[0].mxu0
        %1027 = vmatprep.mubr.bf16.mxu0 0
        %1028 = vmatmul.mubr.bf16.gmra.mrb[0].mxu0 %v900
        %v1029 = vpop.f32.mrb[0].mxu0
        %v1030 = vadd.f32 0.0, %v1029
        %v1031 = vpop.f32.mrb[0].mxu0
        %v1032 = vpop.f32.mrb[0].mxu0
        %v1033 = vadd.f32 0.0, %v1032
        %v1034 = vpop.f32.mrb[0].mxu0
        %1035 = vmatprep.mubr.bf16.mxu0 0
        %1036 = vmatmul.mubr.bf16.gmra.mrb[0].mxu0 %v901
        %v1037 = vpop.f32.mrb[0].mxu0
        %v1038 = vadd.f32 0.0, %v1037
        %v1039 = vpop.f32.mrb[0].mxu0
        %v1040 = vpop.f32.mrb[0].mxu0
        %v1041 = vadd.f32 0.0, %v1040
        %v1042 = vpop.f32.mrb[0].mxu0
        %1043 = vmatprep.mubr.bf16.mxu0 0
        %1044 = vmatmul.mubr.bf16.gmra.mrb[0].mxu0 %v902
        %v1045 = vpop.f32.mrb[0].mxu0
        %v1046 = vadd.f32 0.0, %v1045
        %v1047 = vpop.f32.mrb[0].mxu0
        %v1048 = vpop.f32.mrb[0].mxu0
        %v1049 = vadd.f32 0.0, %v1048
        %v1050 = vpop.f32.mrb[0].mxu0
        %1051 = vmatprep.mubr.bf16.mxu0 0
        %1052 = vmatmul.mubr.bf16.gmra.mrb[0].mxu0 %v903
        %v1053 = vpop.f32.mrb[0].mxu0
        %v1054 = vadd.f32 0.0, %v1053
        %v1055 = vpop.f32.mrb[0].mxu0
        %v1056 = vpop.f32.mrb[0].mxu0
        %v1057 = vadd.f32 0.0, %v1056
        %v1058 = vpop.f32.mrb[0].mxu0
        %1059 = vmatprep.mubr.bf16.mxu0 0
        %1060 = vmatmul.mubr.bf16.gmra.mrb[0].mxu0 %v904
        %v1061 = vpop.f32.mrb[0].mxu0
        %v1062 = vadd.f32 0.0, %v1061
        %v1063 = vpop.f32.mrb[0].mxu0
        %v1064 = vpop.f32.mrb[0].mxu0
        %v1065 = vadd.f32 0.0, %v1064
        %v1066 = vpop.f32.mrb[0].mxu0
        %1067 = vmatprep.mubr.bf16.mxu0 0
        %1068 = vmatmul.mubr.bf16.gmra.mrb[0].mxu0 %v905
        %v1069 = vpop.f32.mrb[0].mxu0
        %v1070 = vadd.f32 0.0, %v1069
        %v1071 = vpop.f32.mrb[0].mxu0
        %v1072 = vpop.f32.mrb[0].mxu0
        %v1073 = vadd.f32 0.0, %v1072
        %v1074 = vpop.f32.mrb[0].mxu0
        %1075 = vmatprep.mubr.bf16.mxu0 0
        %1076 = vmatmul.mubr.bf16.gmra.mrb[0].mxu0 %v906
        %v1077 = vpop.f32.mrb[0].mxu0
        %v1078 = vadd.f32 0.0, %v1077
        %v1079 = vpop.f32.mrb[0].mxu0
        %v1080 = vpop.f32.mrb[0].mxu0
        %v1081 = vadd.f32 0.0, %v1080
        %v1082 = vpop.f32.mrb[0].mxu0
        %1083 = vdwg.mxu0
        %p1084 = scmp.ne.s32.totalorder %s29, 0
        %s1085 = scalar_select %p1084, 1, 0
        %v1086 = vstv %s1085
        %vm1087 = vcmp.eq.s32.totalorder %v1086, 1
        %p1088 = scmp.ne.s32.totalorder %s29, 1
        %s1089 = scalar_select %p1088, 1, 0
        %v1090 = vstv %s1089
        %vm1091 = vcmp.eq.s32.totalorder %v1090, 1
        %v1092 = vsel %vm1087, 1, 0
        %v1093 = vsel %vm1091, 1, 0
        %vm1094 = vcmp.eq.s32.totalorder %v1092, 1
        %vm1095 = vcmp.eq.s32.totalorder %v1093, 1
        %v1096 = vsel %vm1094, %v1006, 0.0
        %v1097 = vsel %vm1094, %v1009, 0.0
        %v1098 = vsel 1, %v1014, 0.0
        %v1099 = vsel 1, %v1017, 0.0
        %v1100 = vsel 1, %v1022, 0.0
        %v1101 = vsel 1, %v1025, 0.0
        %v1102 = vsel 1, %v1030, 0.0
        %v1103 = vsel 1, %v1033, 0.0
        %v1104 = vsel 1, %v1038, 0.0
        %v1105 = vsel 1, %v1041, 0.0
        %v1106 = vsel 1, %v1046, 0.0
        %v1107 = vsel 1, %v1049, 0.0
        %v1108 = vsel 1, %v1054, 0.0
        %v1109 = vsel 1, %v1057, 0.0
        %v1110 = vsel 1, %v1062, 0.0
        %v1111 = vsel 1, %v1065, 0.0
        %v1112 = vsel 1, %v1070, 0.0
        %v1113 = vsel 1, %v1073, 0.0
        %v1114 = vsel %vm1095, %v1078, 0.0
        %v1115 = vsel %vm1095, %v1081, 0.0
        %vm1132 = vcmask 1040384
        %v1133 = vrot.slane %v1096, 7
        %v1134 = vrot.slane %v1097, 7
        %v1135 = vsel %vm1132, %v1133, %v1134
        %v1136 = vrot.slane %v1098, 7
        %v1137 = vrot.slane %v1099, 7
        %v1138 = vsel %vm1132, %v1136, %v1137
        %v1139 = vrot.slane %v1100, 7
        %v1140 = vrot.slane %v1101, 7
        %v1141 = vsel %vm1132, %v1139, %v1140
        %v1142 = vrot.slane %v1102, 7
        %v1143 = vrot.slane %v1103, 7
        %v1144 = vsel %vm1132, %v1142, %v1143
        %v1145 = vrot.slane %v1104, 7
        %v1146 = vrot.slane %v1105, 7
        %v1147 = vsel %vm1132, %v1145, %v1146
        %v1148 = vrot.slane %v1106, 7
        %v1149 = vrot.slane %v1107, 7
        %v1150 = vsel %vm1132, %v1148, %v1149
        %v1151 = vrot.slane %v1108, 7
        %v1152 = vrot.slane %v1109, 7
        %v1153 = vsel %vm1132, %v1151, %v1152
        %v1154 = vrot.slane %v1110, 7
        %v1155 = vrot.slane %v1111, 7
        %v1156 = vsel %vm1132, %v1154, %v1155
        %v1173 = vsel %vm1132, 0.0, %v1133
        %v1174 = vsel %vm1132, 0.0, %v1136
        %v1175 = vsel %vm1132, 0.0, %v1139
        %v1176 = vsel %vm1132, 0.0, %v1142
        %v1177 = vsel %vm1132, 0.0, %v1145
        %v1178 = vsel %vm1132, 0.0, %v1148
        %v1179 = vsel %vm1132, 0.0, %v1151
        %v1180 = vsel %vm1132, 0.0, %v1154
        %v1181 = vadd.f32 %v1173, 0.0
        %v1182 = vadd.f32 %v1135, 0.0
        %v1183 = vadd.f32 %v1174, 0.0
        %v1184 = vadd.f32 %v1138, 0.0
        %v1185 = vadd.f32 %v1175, 0.0
        %v1186 = vadd.f32 %v1141, 0.0
        %v1187 = vadd.f32 %v1176, 0.0
        %v1188 = vadd.f32 %v1144, 0.0
        %v1189 = vadd.f32 %v1177, 0.0
        %v1190 = vadd.f32 %v1147, 0.0
        %v1191 = vadd.f32 %v1178, 0.0
        %v1192 = vadd.f32 %v1150, 0.0
        %v1193 = vadd.f32 %v1179, 0.0
        %v1194 = vadd.f32 %v1153, 0.0
        %v1195 = vadd.f32 %v1180, 0.0
        %v1196 = vadd.f32 %v1156, 0.0
        %1197 = vrot.lane.b32.xlu0 %v1096, 124
        %v1198 = vpop.permute.xlu0 %1197
        %1199 = vrot.lane.b32.xlu0 %v1097, 124
        %v1200 = vpop.permute.xlu0 %1199
        %1201 = vrot.lane.b32.xlu0 %v1098, 124
        %v1202 = vpop.permute.xlu0 %1201
        %1203 = vrot.lane.b32.xlu0 %v1099, 124
        %v1204 = vpop.permute.xlu0 %1203
        %1205 = vrot.lane.b32.xlu0 %v1100, 124
        %v1206 = vpop.permute.xlu0 %1205
        %1207 = vrot.lane.b32.xlu0 %v1101, 124
        %v1208 = vpop.permute.xlu0 %1207
        %1209 = vrot.lane.b32.xlu0 %v1102, 124
        %v1210 = vpop.permute.xlu0 %1209
        %1211 = vrot.lane.b32.xlu0 %v1103, 124
        %v1212 = vpop.permute.xlu0 %1211
        %1213 = vrot.lane.b32.xlu0 %v1104, 124
        %v1214 = vpop.permute.xlu0 %1213
        %1215 = vrot.lane.b32.xlu0 %v1105, 124
        %v1216 = vpop.permute.xlu0 %1215
        %1217 = vrot.lane.b32.xlu0 %v1106, 124
        %v1218 = vpop.permute.xlu0 %1217
        %1219 = vrot.lane.b32.xlu0 %v1107, 124
        %v1220 = vpop.permute.xlu0 %1219
        %1221 = vrot.lane.b32.xlu0 %v1108, 124
        %v1222 = vpop.permute.xlu0 %1221
        %1223 = vrot.lane.b32.xlu0 %v1109, 124
        %v1224 = vpop.permute.xlu0 %1223
        %1225 = vrot.lane.b32.xlu0 %v1110, 124
        %v1226 = vpop.permute.xlu0 %1225
        %1227 = vrot.lane.b32.xlu0 %v1111, 124
        %v1228 = vpop.permute.xlu0 %1227
        %v1245 = vadd.f32 %v1181, %v1198
        %v1246 = vadd.f32 %v1182, %v1200
        %v1247 = vadd.f32 %v1183, %v1202
        %v1248 = vadd.f32 %v1184, %v1204
        %v1249 = vadd.f32 %v1185, %v1206
        %v1250 = vadd.f32 %v1186, %v1208
        %v1251 = vadd.f32 %v1187, %v1210
        %v1252 = vadd.f32 %v1188, %v1212
        %v1253 = vadd.f32 %v1189, %v1214
        %v1254 = vadd.f32 %v1190, %v1216
        %v1255 = vadd.f32 %v1191, %v1218
        %v1256 = vadd.f32 %v1192, %v1220
        %v1257 = vadd.f32 %v1193, %v1222
        %v1258 = vadd.f32 %v1194, %v1224
        %v1259 = vadd.f32 %v1195, %v1226
        %v1260 = vadd.f32 %v1196, %v1228
        %vm1261 = vcmask 1046528
        %v1262 = vrot.slane %v1096, 1
        %v1263 = vrot.slane %v1097, 1
        %v1264 = vsel %vm1261, %v1262, %v1263
        %v1265 = vrot.slane %v1098, 1
        %v1266 = vrot.slane %v1099, 1
        %v1267 = vsel %vm1261, %v1265, %v1266
        %v1268 = vrot.slane %v1100, 1
        %v1269 = vrot.slane %v1101, 1
        %v1270 = vsel %vm1261, %v1268, %v1269
        %v1271 = vrot.slane %v1102, 1
        %v1272 = vrot.slane %v1103, 1
        %v1273 = vsel %vm1261, %v1271, %v1272
        %v1274 = vrot.slane %v1104, 1
        %v1275 = vrot.slane %v1105, 1
        %v1276 = vsel %vm1261, %v1274, %v1275
        %v1277 = vrot.slane %v1106, 1
        %v1278 = vrot.slane %v1107, 1
        %v1279 = vsel %vm1261, %v1277, %v1278
        %v1280 = vrot.slane %v1108, 1
        %v1281 = vrot.slane %v1109, 1
        %v1282 = vsel %vm1261, %v1280, %v1281
        %v1283 = vrot.slane %v1110, 1
        %v1284 = vrot.slane %v1111, 1
        %v1285 = vsel %vm1261, %v1283, %v1284
        %v1294 = vsel %vm1261, %v1263, 0.0
        %v1295 = vsel %vm1261, %v1266, 0.0
        %v1296 = vsel %vm1261, %v1269, 0.0
        %v1297 = vsel %vm1261, %v1272, 0.0
        %v1298 = vsel %vm1261, %v1275, 0.0
        %v1299 = vsel %vm1261, %v1278, 0.0
        %v1300 = vsel %vm1261, %v1281, 0.0
        %v1301 = vsel %vm1261, %v1284, 0.0
        %1310 = vrot.lane.b32.xlu0 %v1264, 120
        %v1311 = vpop.permute.xlu0 %1310
        %1312 = vrot.lane.b32.xlu0 %v1294, 120
        %v1313 = vpop.permute.xlu0 %1312
        %1314 = vrot.lane.b32.xlu0 %v1267, 120
        %v1315 = vpop.permute.xlu0 %1314
        %1316 = vrot.lane.b32.xlu0 %v1295, 120
        %v1317 = vpop.permute.xlu0 %1316
        %1318 = vrot.lane.b32.xlu0 %v1270, 120
        %v1319 = vpop.permute.xlu0 %1318
        %1320 = vrot.lane.b32.xlu0 %v1296, 120
        %v1321 = vpop.permute.xlu0 %1320
        %1322 = vrot.lane.b32.xlu0 %v1273, 120
        %v1323 = vpop.permute.xlu0 %1322
        %1324 = vrot.lane.b32.xlu0 %v1297, 120
        %v1325 = vpop.permute.xlu0 %1324
        %1326 = vrot.lane.b32.xlu0 %v1276, 120
        %v1327 = vpop.permute.xlu0 %1326
        %1328 = vrot.lane.b32.xlu0 %v1298, 120
        %v1329 = vpop.permute.xlu0 %1328
        %1330 = vrot.lane.b32.xlu0 %v1279, 120
        %v1331 = vpop.permute.xlu0 %1330
        %1332 = vrot.lane.b32.xlu0 %v1299, 120
        %v1333 = vpop.permute.xlu0 %1332
        %1334 = vrot.lane.b32.xlu0 %v1282, 120
        %v1335 = vpop.permute.xlu0 %1334
        %1336 = vrot.lane.b32.xlu0 %v1300, 120
        %v1337 = vpop.permute.xlu0 %1336
        %1338 = vrot.lane.b32.xlu0 %v1285, 120
        %v1339 = vpop.permute.xlu0 %1338
        %1340 = vrot.lane.b32.xlu0 %v1301, 120
        %v1341 = vpop.permute.xlu0 %1340
        %v1358 = vadd.f32 %v1245, %v1311
        %v1359 = vadd.f32 %v1246, %v1313
        %v1360 = vadd.f32 %v1247, %v1315
        %v1361 = vadd.f32 %v1248, %v1317
        %v1362 = vadd.f32 %v1249, %v1319
        %v1363 = vadd.f32 %v1250, %v1321
        %v1364 = vadd.f32 %v1251, %v1323
        %v1365 = vadd.f32 %v1252, %v1325
        %v1366 = vadd.f32 %v1253, %v1327
        %v1367 = vadd.f32 %v1254, %v1329
        %v1368 = vadd.f32 %v1255, %v1331
        %v1369 = vadd.f32 %v1256, %v1333
        %v1370 = vadd.f32 %v1257, %v1335
        %v1371 = vadd.f32 %v1258, %v1337
        %v1372 = vadd.f32 %v1259, %v1339
        %v1373 = vadd.f32 %v1260, %v1341
        %v1376 = vrot.slane %v1112, 7
        %v1377 = vrot.slane %v1113, 7
        %v1378 = vsel %vm1132, %v1376, %v1377
        %1379 = vrot.lane.b32.xlu0 %v1136, 116
        %v1380 = vpop.permute.xlu0 %1379
        %1381 = vrot.lane.b32.xlu0 %v1138, 116
        %v1382 = vpop.permute.xlu0 %1381
        %1383 = vrot.lane.b32.xlu0 %v1139, 116
        %v1384 = vpop.permute.xlu0 %1383
        %1385 = vrot.lane.b32.xlu0 %v1141, 116
        %v1386 = vpop.permute.xlu0 %1385
        %1387 = vrot.lane.b32.xlu0 %v1142, 116
        %v1388 = vpop.permute.xlu0 %1387
        %1389 = vrot.lane.b32.xlu0 %v1144, 116
        %v1390 = vpop.permute.xlu0 %1389
        %1391 = vrot.lane.b32.xlu0 %v1145, 116
        %v1392 = vpop.permute.xlu0 %1391
        %1393 = vrot.lane.b32.xlu0 %v1147, 116
        %v1394 = vpop.permute.xlu0 %1393
        %1395 = vrot.lane.b32.xlu0 %v1148, 116
        %v1396 = vpop.permute.xlu0 %1395
        %1397 = vrot.lane.b32.xlu0 %v1150, 116
        %v1398 = vpop.permute.xlu0 %1397
        %1399 = vrot.lane.b32.xlu0 %v1151, 116
        %v1400 = vpop.permute.xlu0 %1399
        %1401 = vrot.lane.b32.xlu0 %v1153, 116
        %v1402 = vpop.permute.xlu0 %1401
        %1403 = vrot.lane.b32.xlu0 %v1154, 116
        %v1404 = vpop.permute.xlu0 %1403
        %1405 = vrot.lane.b32.xlu0 %v1156, 116
        %v1406 = vpop.permute.xlu0 %1405
        %1407 = vrot.lane.b32.xlu0 %v1376, 116
        %v1408 = vpop.permute.xlu0 %1407
        %1409 = vrot.lane.b32.xlu0 %v1378, 116
        %v1410 = vpop.permute.xlu0 %1409
        %v1427 = vsel %vm1132, 0.0, %v1380
        %v1428 = vsel %vm1132, 0.0, %v1384
        %v1429 = vsel %vm1132, 0.0, %v1388
        %v1430 = vsel %vm1132, 0.0, %v1392
        %v1431 = vsel %vm1132, 0.0, %v1396
        %v1432 = vsel %vm1132, 0.0, %v1400
        %v1433 = vsel %vm1132, 0.0, %v1404
        %v1434 = vsel %vm1132, 0.0, %v1408
        %v1435 = vadd.f32 %v1358, %v1427
        %v1436 = vadd.f32 %v1359, %v1382
        %v1437 = vadd.f32 %v1360, %v1428
        %v1438 = vadd.f32 %v1361, %v1386
        %v1439 = vadd.f32 %v1362, %v1429
        %v1440 = vadd.f32 %v1363, %v1390
        %v1441 = vadd.f32 %v1364, %v1430
        %v1442 = vadd.f32 %v1365, %v1394
        %v1443 = vadd.f32 %v1366, %v1431
        %v1444 = vadd.f32 %v1367, %v1398
        %v1445 = vadd.f32 %v1368, %v1432
        %v1446 = vadd.f32 %v1369, %v1402
        %v1447 = vadd.f32 %v1370, %v1433
        %v1448 = vadd.f32 %v1371, %v1406
        %v1449 = vadd.f32 %v1372, %v1434
        %v1450 = vadd.f32 %v1373, %v1410
        %1451 = vrot.lane.b32.xlu0 %v1098, 112
        %v1452 = vpop.permute.xlu0 %1451
        %1453 = vrot.lane.b32.xlu0 %v1099, 112
        %v1454 = vpop.permute.xlu0 %1453
        %1455 = vrot.lane.b32.xlu0 %v1100, 112
        %v1456 = vpop.permute.xlu0 %1455
        %1457 = vrot.lane.b32.xlu0 %v1101, 112
        %v1458 = vpop.permute.xlu0 %1457
        %1459 = vrot.lane.b32.xlu0 %v1102, 112
        %v1460 = vpop.permute.xlu0 %1459
        %1461 = vrot.lane.b32.xlu0 %v1103, 112
        %v1462 = vpop.permute.xlu0 %1461
        %1463 = vrot.lane.b32.xlu0 %v1104, 112
        %v1464 = vpop.permute.xlu0 %1463
        %1465 = vrot.lane.b32.xlu0 %v1105, 112
        %v1466 = vpop.permute.xlu0 %1465
        %1467 = vrot.lane.b32.xlu0 %v1106, 112
        %v1468 = vpop.permute.xlu0 %1467
        %1469 = vrot.lane.b32.xlu0 %v1107, 112
        %v1470 = vpop.permute.xlu0 %1469
        %1471 = vrot.lane.b32.xlu0 %v1108, 112
        %v1472 = vpop.permute.xlu0 %1471
        %1473 = vrot.lane.b32.xlu0 %v1109, 112
        %v1474 = vpop.permute.xlu0 %1473
        %1475 = vrot.lane.b32.xlu0 %v1110, 112
        %v1476 = vpop.permute.xlu0 %1475
        %1477 = vrot.lane.b32.xlu0 %v1111, 112
        %v1478 = vpop.permute.xlu0 %1477
        %1479 = vrot.lane.b32.xlu0 %v1112, 112
        %v1480 = vpop.permute.xlu0 %1479
        %1481 = vrot.lane.b32.xlu0 %v1113, 112
        %v1482 = vpop.permute.xlu0 %1481
        %v1499 = vadd.f32 %v1435, %v1452
        %v1500 = vadd.f32 %v1436, %v1454
        %v1501 = vadd.f32 %v1437, %v1456
        %v1502 = vadd.f32 %v1438, %v1458
        %v1503 = vadd.f32 %v1439, %v1460
        %v1504 = vadd.f32 %v1440, %v1462
        %v1505 = vadd.f32 %v1441, %v1464
        %v1506 = vadd.f32 %v1442, %v1466
        %v1507 = vadd.f32 %v1443, %v1468
        %v1508 = vadd.f32 %v1444, %v1470
        %v1509 = vadd.f32 %v1445, %v1472
        %v1510 = vadd.f32 %v1446, %v1474
        %v1511 = vadd.f32 %v1447, %v1476
        %v1512 = vadd.f32 %v1448, %v1478
        %v1513 = vadd.f32 %v1449, %v1480
        %v1514 = vadd.f32 %v1450, %v1482
        %v1515 = vrot.slane %v1112, 1
        %v1516 = vrot.slane %v1113, 1
        %v1517 = vsel %vm1261, %v1515, %v1516
        %v1519 = vsel %vm1261, %v1516, 0.0
        %1521 = vrot.lane.b32.xlu0 %v1267, 108
        %v1522 = vpop.permute.xlu0 %1521
        %1523 = vrot.lane.b32.xlu0 %v1295, 108
        %v1524 = vpop.permute.xlu0 %1523
        %1525 = vrot.lane.b32.xlu0 %v1270, 108
        %v1526 = vpop.permute.xlu0 %1525
        %1527 = vrot.lane.b32.xlu0 %v1296, 108
        %v1528 = vpop.permute.xlu0 %1527
        %1529 = vrot.lane.b32.xlu0 %v1273, 108
        %v1530 = vpop.permute.xlu0 %1529
        %1531 = vrot.lane.b32.xlu0 %v1297, 108
        %v1532 = vpop.permute.xlu0 %1531
        %1533 = vrot.lane.b32.xlu0 %v1276, 108
        %v1534 = vpop.permute.xlu0 %1533
        %1535 = vrot.lane.b32.xlu0 %v1298, 108
        %v1536 = vpop.permute.xlu0 %1535
        %1537 = vrot.lane.b32.xlu0 %v1279, 108
        %v1538 = vpop.permute.xlu0 %1537
        %1539 = vrot.lane.b32.xlu0 %v1299, 108
        %v1540 = vpop.permute.xlu0 %1539
        %1541 = vrot.lane.b32.xlu0 %v1282, 108
        %v1542 = vpop.permute.xlu0 %1541
        %1543 = vrot.lane.b32.xlu0 %v1300, 108
        %v1544 = vpop.permute.xlu0 %1543
        %1545 = vrot.lane.b32.xlu0 %v1285, 108
        %v1546 = vpop.permute.xlu0 %1545
        %1547 = vrot.lane.b32.xlu0 %v1301, 108
        %v1548 = vpop.permute.xlu0 %1547
        %1549 = vrot.lane.b32.xlu0 %v1517, 108
        %v1550 = vpop.permute.xlu0 %1549
        %1551 = vrot.lane.b32.xlu0 %v1519, 108
        %v1552 = vpop.permute.xlu0 %1551
        %v1569 = vadd.f32 %v1499, %v1522
        %v1570 = vadd.f32 %v1500, %v1524
        %v1571 = vadd.f32 %v1501, %v1526
        %v1572 = vadd.f32 %v1502, %v1528
        %v1573 = vadd.f32 %v1503, %v1530
        %v1574 = vadd.f32 %v1504, %v1532
        %v1575 = vadd.f32 %v1505, %v1534
        %v1576 = vadd.f32 %v1506, %v1536
        %v1577 = vadd.f32 %v1507, %v1538
        %v1578 = vadd.f32 %v1508, %v1540
        %v1579 = vadd.f32 %v1509, %v1542
        %v1580 = vadd.f32 %v1510, %v1544
        %v1581 = vadd.f32 %v1511, %v1546
        %v1582 = vadd.f32 %v1512, %v1548
        %v1583 = vadd.f32 %v1513, %v1550
        %v1584 = vadd.f32 %v1514, %v1552
        %v1587 = vrot.slane %v1114, 7
        %v1588 = vrot.slane %v1115, 7
        %v1589 = vsel %vm1132, %v1587, %v1588
        %1590 = vrot.lane.b32.xlu0 %v1139, 104
        %v1591 = vpop.permute.xlu0 %1590
        %1592 = vrot.lane.b32.xlu0 %v1141, 104
        %v1593 = vpop.permute.xlu0 %1592
        %1594 = vrot.lane.b32.xlu0 %v1142, 104
        %v1595 = vpop.permute.xlu0 %1594
        %1596 = vrot.lane.b32.xlu0 %v1144, 104
        %v1597 = vpop.permute.xlu0 %1596
        %1598 = vrot.lane.b32.xlu0 %v1145, 104
        %v1599 = vpop.permute.xlu0 %1598
        %1600 = vrot.lane.b32.xlu0 %v1147, 104
        %v1601 = vpop.permute.xlu0 %1600
        %1602 = vrot.lane.b32.xlu0 %v1148, 104
        %v1603 = vpop.permute.xlu0 %1602
        %1604 = vrot.lane.b32.xlu0 %v1150, 104
        %v1605 = vpop.permute.xlu0 %1604
        %1606 = vrot.lane.b32.xlu0 %v1151, 104
        %v1607 = vpop.permute.xlu0 %1606
        %1608 = vrot.lane.b32.xlu0 %v1153, 104
        %v1609 = vpop.permute.xlu0 %1608
        %1610 = vrot.lane.b32.xlu0 %v1154, 104
        %v1611 = vpop.permute.xlu0 %1610
        %1612 = vrot.lane.b32.xlu0 %v1156, 104
        %v1613 = vpop.permute.xlu0 %1612
        %1614 = vrot.lane.b32.xlu0 %v1376, 104
        %v1615 = vpop.permute.xlu0 %1614
        %1616 = vrot.lane.b32.xlu0 %v1378, 104
        %v1617 = vpop.permute.xlu0 %1616
        %1618 = vrot.lane.b32.xlu0 %v1587, 104
        %v1619 = vpop.permute.xlu0 %1618
        %1620 = vrot.lane.b32.xlu0 %v1589, 104
        %v1621 = vpop.permute.xlu0 %1620
        %v1638 = vsel %vm1132, 0.0, %v1591
        %v1639 = vsel %vm1132, 0.0, %v1595
        %v1640 = vsel %vm1132, 0.0, %v1599
        %v1641 = vsel %vm1132, 0.0, %v1603
        %v1642 = vsel %vm1132, 0.0, %v1607
        %v1643 = vsel %vm1132, 0.0, %v1611
        %v1644 = vsel %vm1132, 0.0, %v1615
        %v1645 = vsel %vm1132, 0.0, %v1619
        %v1646 = vadd.f32 %v1569, %v1638
        %v1647 = vadd.f32 %v1570, %v1593
        %v1648 = vadd.f32 %v1571, %v1639
        %v1649 = vadd.f32 %v1572, %v1597
        %v1650 = vadd.f32 %v1573, %v1640
        %v1651 = vadd.f32 %v1574, %v1601
        %v1652 = vadd.f32 %v1575, %v1641
        %v1653 = vadd.f32 %v1576, %v1605
        %v1654 = vadd.f32 %v1577, %v1642
        %v1655 = vadd.f32 %v1578, %v1609
        %v1656 = vadd.f32 %v1579, %v1643
        %v1657 = vadd.f32 %v1580, %v1613
        %v1658 = vadd.f32 %v1581, %v1644
        %v1659 = vadd.f32 %v1582, %v1617
        %v1660 = vadd.f32 %v1583, %v1645
        %v1661 = vadd.f32 %v1584, %v1621
        %1662 = vrot.lane.b32.xlu0 %v1100, 100
        %v1663 = vpop.permute.xlu0 %1662
        %1664 = vrot.lane.b32.xlu0 %v1101, 100
        %v1665 = vpop.permute.xlu0 %1664
        %1666 = vrot.lane.b32.xlu0 %v1102, 100
        %v1667 = vpop.permute.xlu0 %1666
        %1668 = vrot.lane.b32.xlu0 %v1103, 100
        %v1669 = vpop.permute.xlu0 %1668
        %1670 = vrot.lane.b32.xlu0 %v1104, 100
        %v1671 = vpop.permute.xlu0 %1670
        %1672 = vrot.lane.b32.xlu0 %v1105, 100
        %v1673 = vpop.permute.xlu0 %1672
        %1674 = vrot.lane.b32.xlu0 %v1106, 100
        %v1675 = vpop.permute.xlu0 %1674
        %1676 = vrot.lane.b32.xlu0 %v1107, 100
        %v1677 = vpop.permute.xlu0 %1676
        %1678 = vrot.lane.b32.xlu0 %v1108, 100
        %v1679 = vpop.permute.xlu0 %1678
        %1680 = vrot.lane.b32.xlu0 %v1109, 100
        %v1681 = vpop.permute.xlu0 %1680
        %1682 = vrot.lane.b32.xlu0 %v1110, 100
        %v1683 = vpop.permute.xlu0 %1682
        %1684 = vrot.lane.b32.xlu0 %v1111, 100
        %v1685 = vpop.permute.xlu0 %1684
        %1686 = vrot.lane.b32.xlu0 %v1112, 100
        %v1687 = vpop.permute.xlu0 %1686
        %1688 = vrot.lane.b32.xlu0 %v1113, 100
        %v1689 = vpop.permute.xlu0 %1688
        %1690 = vrot.lane.b32.xlu0 %v1114, 100
        %v1691 = vpop.permute.xlu0 %1690
        %1692 = vrot.lane.b32.xlu0 %v1115, 100
        %v1693 = vpop.permute.xlu0 %1692
        %v1710 = vadd.f32 %v1646, %v1663
        %v1711 = vadd.f32 %v1647, %v1665
        %v1712 = vadd.f32 %v1648, %v1667
        %v1713 = vadd.f32 %v1649, %v1669
        %v1714 = vadd.f32 %v1650, %v1671
        %v1715 = vadd.f32 %v1651, %v1673
        %v1716 = vadd.f32 %v1652, %v1675
        %v1717 = vadd.f32 %v1653, %v1677
        %v1718 = vadd.f32 %v1654, %v1679
        %v1719 = vadd.f32 %v1655, %v1681
        %v1720 = vadd.f32 %v1656, %v1683
        %v1721 = vadd.f32 %v1657, %v1685
        %v1722 = vadd.f32 %v1658, %v1687
        %v1723 = vadd.f32 %v1659, %v1689
        %v1724 = vadd.f32 %v1660, %v1691
        %v1725 = vadd.f32 %v1661, %v1693
        %v1726 = vrot.slane %v1114, 1
        %v1727 = vrot.slane %v1115, 1
        %v1728 = vsel %vm1261, %v1726, %v1727
        %v1730 = vsel %vm1261, %v1727, 0.0
        %1732 = vrot.lane.b32.xlu0 %v1270, 96
        %v1733 = vpop.permute.xlu0 %1732
        %1734 = vrot.lane.b32.xlu0 %v1296, 96
        %v1735 = vpop.permute.xlu0 %1734
        %1736 = vrot.lane.b32.xlu0 %v1273, 96
        %v1737 = vpop.permute.xlu0 %1736
        %1738 = vrot.lane.b32.xlu0 %v1297, 96
        %v1739 = vpop.permute.xlu0 %1738
        %1740 = vrot.lane.b32.xlu0 %v1276, 96
        %v1741 = vpop.permute.xlu0 %1740
        %1742 = vrot.lane.b32.xlu0 %v1298, 96
        %v1743 = vpop.permute.xlu0 %1742
        %1744 = vrot.lane.b32.xlu0 %v1279, 96
        %v1745 = vpop.permute.xlu0 %1744
        %1746 = vrot.lane.b32.xlu0 %v1299, 96
        %v1747 = vpop.permute.xlu0 %1746
        %1748 = vrot.lane.b32.xlu0 %v1282, 96
        %v1749 = vpop.permute.xlu0 %1748
        %1750 = vrot.lane.b32.xlu0 %v1300, 96
        %v1751 = vpop.permute.xlu0 %1750
        %1752 = vrot.lane.b32.xlu0 %v1285, 96
        %v1753 = vpop.permute.xlu0 %1752
        %1754 = vrot.lane.b32.xlu0 %v1301, 96
        %v1755 = vpop.permute.xlu0 %1754
        %1756 = vrot.lane.b32.xlu0 %v1517, 96
        %v1757 = vpop.permute.xlu0 %1756
        %1758 = vrot.lane.b32.xlu0 %v1519, 96
        %v1759 = vpop.permute.xlu0 %1758
        %1760 = vrot.lane.b32.xlu0 %v1728, 96
        %v1761 = vpop.permute.xlu0 %1760
        %1762 = vrot.lane.b32.xlu0 %v1730, 96
        %v1763 = vpop.permute.xlu0 %1762
        %v1780 = vadd.f32 %v1710, %v1733
        %v1781 = vadd.f32 %v1711, %v1735
        %v1782 = vadd.f32 %v1712, %v1737
        %v1783 = vadd.f32 %v1713, %v1739
        %v1784 = vadd.f32 %v1714, %v1741
        %v1785 = vadd.f32 %v1715, %v1743
        %v1786 = vadd.f32 %v1716, %v1745
        %v1787 = vadd.f32 %v1717, %v1747
        %v1788 = vadd.f32 %v1718, %v1749
        %v1789 = vadd.f32 %v1719, %v1751
        %v1790 = vadd.f32 %v1720, %v1753
        %v1791 = vadd.f32 %v1721, %v1755
        %v1792 = vadd.f32 %v1722, %v1757
        %v1793 = vadd.f32 %v1723, %v1759
        %v1794 = vadd.f32 %v1724, %v1761
        %v1795 = vadd.f32 %v1725, %v1763
        %v1796 = vld [vmem:[%s7] sm:$0x1]
        %v1798 = vlaneseq
        %v1799 = vshrl.u32 %v1798, 7
        %v1800 = vsub.s32 0, %v1799
        %v1801 = vrot.slane %v1796, %v1800
        %v1803 = vadd.f32 %v1780, %v1801
        %v1804 = vadd.f32 %v1781, %v1801
        %v1805 = vadd.f32 %v1782, %v1801
        %v1806 = vadd.f32 %v1783, %v1801
        %v1807 = vadd.f32 %v1784, %v1801
        %v1808 = vadd.f32 %v1785, %v1801
        %v1809 = vadd.f32 %v1786, %v1801
        %v1810 = vadd.f32 %v1787, %v1801
        %v1811 = vadd.f32 %v1788, %v1801
        %v1812 = vadd.f32 %v1789, %v1801
        %v1813 = vadd.f32 %v1790, %v1801
        %v1814 = vadd.f32 %v1791, %v1801
        %v1815 = vadd.f32 %v1792, %v1801
        %v1816 = vadd.f32 %v1793, %v1801
        %v1817 = vadd.f32 %v1794, %v1801
        %v1818 = vadd.f32 %v1795, %v1801
        %v1819 = vxor.u32 %v1803, 2147483648
        %v1820 = vxor.u32 %v1804, 2147483648
        %v1821 = vxor.u32 %v1805, 2147483648
        %v1822 = vxor.u32 %v1806, 2147483648
        %v1823 = vxor.u32 %v1807, 2147483648
        %v1824 = vxor.u32 %v1808, 2147483648
        %v1825 = vxor.u32 %v1809, 2147483648
        %v1826 = vxor.u32 %v1810, 2147483648
        %v1827 = vxor.u32 %v1811, 2147483648
        %v1828 = vxor.u32 %v1812, 2147483648
        %v1829 = vxor.u32 %v1813, 2147483648
        %v1830 = vxor.u32 %v1814, 2147483648
        %v1831 = vxor.u32 %v1815, 2147483648
        %v1832 = vxor.u32 %v1816, 2147483648
        %v1833 = vxor.u32 %v1817, 2147483648
        %v1834 = vxor.u32 %v1818, 2147483648
        %v1835 = vmul.f32 %v1819, 1.442695
        %v1836 = vpow.pop %v1835
        %v1837 = vmul.f32 %v1820, 1.442695
        %v1838 = vpow.pop %v1837
        %v1839 = vmul.f32 %v1821, 1.442695
        %v1840 = vpow.pop %v1839
        %v1841 = vmul.f32 %v1822, 1.442695
        %v1842 = vpow.pop %v1841
        %v1843 = vmul.f32 %v1823, 1.442695
        %v1844 = vpow.pop %v1843
        %v1845 = vmul.f32 %v1824, 1.442695
        %v1846 = vpow.pop %v1845
        %v1847 = vmul.f32 %v1825, 1.442695
        %v1848 = vpow.pop %v1847
        %v1849 = vmul.f32 %v1826, 1.442695
        %v1850 = vpow.pop %v1849
        %v1851 = vmul.f32 %v1827, 1.442695
        %v1852 = vpow.pop %v1851
        %v1853 = vmul.f32 %v1828, 1.442695
        %v1854 = vpow.pop %v1853
        %v1855 = vmul.f32 %v1829, 1.442695
        %v1856 = vpow.pop %v1855
        %v1857 = vmul.f32 %v1830, 1.442695
        %v1858 = vpow.pop %v1857
        %v1859 = vmul.f32 %v1831, 1.442695
        %v1860 = vpow.pop %v1859
        %v1861 = vmul.f32 %v1832, 1.442695
        %v1862 = vpow.pop %v1861
        %v1863 = vmul.f32 %v1833, 1.442695
        %v1864 = vpow.pop %v1863
        %v1865 = vmul.f32 %v1834, 1.442695
        %v1866 = vpow.pop %v1865
        %v1867 = vadd.f32 %v1836, 1.0
        %v1868 = vadd.f32 %v1838, 1.0
        %v1869 = vadd.f32 %v1840, 1.0
        %v1870 = vadd.f32 %v1842, 1.0
        %v1871 = vadd.f32 %v1844, 1.0
        %v1872 = vadd.f32 %v1846, 1.0
        %v1873 = vadd.f32 %v1848, 1.0
        %v1874 = vadd.f32 %v1850, 1.0
        %v1875 = vadd.f32 %v1852, 1.0
        %v1876 = vadd.f32 %v1854, 1.0
        %v1877 = vadd.f32 %v1856, 1.0
        %v1878 = vadd.f32 %v1858, 1.0
        %v1879 = vadd.f32 %v1860, 1.0
        %v1880 = vadd.f32 %v1862, 1.0
        %v1881 = vadd.f32 %v1864, 1.0
        %v1882 = vadd.f32 %v1866, 1.0
        %v1883 = vrcp.pop %v1867
        %v1884 = vmul.f32 1.0, %v1883
        %v1885 = vrcp.pop %v1868
        %v1886 = vmul.f32 1.0, %v1885
        %v1887 = vrcp.pop %v1869
        %v1888 = vmul.f32 1.0, %v1887
        %v1889 = vrcp.pop %v1870
        %v1890 = vmul.f32 1.0, %v1889
        %v1891 = vrcp.pop %v1871
        %v1892 = vmul.f32 1.0, %v1891
        %v1893 = vrcp.pop %v1872
        %v1894 = vmul.f32 1.0, %v1893
        %v1895 = vrcp.pop %v1873
        %v1896 = vmul.f32 1.0, %v1895
        %v1897 = vrcp.pop %v1874
        %v1898 = vmul.f32 1.0, %v1897
        %v1899 = vrcp.pop %v1875
        %v1900 = vmul.f32 1.0, %v1899
        %v1901 = vrcp.pop %v1876
        %v1902 = vmul.f32 1.0, %v1901
        %v1903 = vrcp.pop %v1877
        %v1904 = vmul.f32 1.0, %v1903
        %v1905 = vrcp.pop %v1878
        %v1906 = vmul.f32 1.0, %v1905
        %v1907 = vrcp.pop %v1879
        %v1908 = vmul.f32 1.0, %v1907
        %v1909 = vrcp.pop %v1880
        %v1910 = vmul.f32 1.0, %v1909
        %v1911 = vrcp.pop %v1881
        %v1912 = vmul.f32 1.0, %v1911
        %v1913 = vrcp.pop %v1882
        %v1914 = vmul.f32 1.0, %v1913
        %v1915 = vld [vmem:[%s401] sm:$0xff]
        %1917 = vrot.lane.b32.xlu0 %v1915, 126
        %v1918 = vpop.permute.xlu0 %1917
        %1920 = vrot.lane.b32.xlu0 %v1915, 124
        %v1921 = vpop.permute.xlu0 %1920
        %1923 = vrot.lane.b32.xlu0 %v1915, 122
        %v1924 = vpop.permute.xlu0 %1923
        %1926 = vrot.lane.b32.xlu0 %v1915, 120
        %v1927 = vpop.permute.xlu0 %1926
        %1929 = vrot.lane.b32.xlu0 %v1915, 118
        %v1930 = vpop.permute.xlu0 %1929
        %1932 = vrot.lane.b32.xlu0 %v1915, 116
        %v1933 = vpop.permute.xlu0 %1932
        %1935 = vrot.lane.b32.xlu0 %v1915, 114
        %v1936 = vpop.permute.xlu0 %1935
        %1938 = vrot.lane.b32.xlu0 %v1915, 112
        %v1939 = vpop.permute.xlu0 %1938
        %1941 = vrot.lane.b32.xlu0 %v1915, 110
        %v1942 = vpop.permute.xlu0 %1941
        %1944 = vrot.lane.b32.xlu0 %v1915, 108
        %v1945 = vpop.permute.xlu0 %1944
        %1947 = vrot.lane.b32.xlu0 %v1915, 106
        %v1948 = vpop.permute.xlu0 %1947
        %1950 = vrot.lane.b32.xlu0 %v1915, 104
        %v1951 = vpop.permute.xlu0 %1950
        %1953 = vrot.lane.b32.xlu0 %v1915, 102
        %v1954 = vpop.permute.xlu0 %1953
        %1956 = vrot.lane.b32.xlu0 %v1915, 100
        %v1957 = vpop.permute.xlu0 %1956
        %1959 = vrot.lane.b32.xlu0 %v1915, 98
        %v1960 = vpop.permute.xlu0 %1959
        %v1962 = vcombine.low %v1915, %v1921
        %v1963 = vcombine.high %v1915, %v1921
        %v1965 = vunpack.c.l.s4 1983009808
        %v1966 = vunpack.c.0.s8 %v1965
        %v1967 = vlaneseq
        %v1968 = vshrl.u32 %v1967, 7
        %v1969 = vsub.s32 %v1966, %v1968
        %v1970 = vrot.slane %v1962, %v1969
        %v1972 = vunpack.c.l.s4 1983009808
        %v1973 = vunpack.c.0.s8 %v1972
        %v1974 = vlaneseq
        %v1975 = vshrl.u32 %v1974, 7
        %v1976 = vsub.s32 %v1973, %v1975
        %v1977 = vrot.slane %v1963, %v1976
        %v1978 = vcombine.low %v1918, %v1924
        %v1979 = vcombine.high %v1918, %v1924
        %v1981 = vunpack.c.l.s4 1983009808
        %v1982 = vunpack.c.0.s8 %v1981
        %v1983 = vlaneseq
        %v1984 = vshrl.u32 %v1983, 7
        %v1985 = vsub.s32 %v1982, %v1984
        %v1986 = vrot.slane %v1978, %v1985
        %v1988 = vunpack.c.l.s4 1983009808
        %v1989 = vunpack.c.0.s8 %v1988
        %v1990 = vlaneseq
        %v1991 = vshrl.u32 %v1990, 7
        %v1992 = vsub.s32 %v1989, %v1991
        %v1993 = vrot.slane %v1979, %v1992
        %v1994 = vcombine.low %v1927, %v1933
        %v1995 = vcombine.high %v1927, %v1933
        %v1997 = vunpack.c.l.s4 1983009808
        %v1998 = vunpack.c.0.s8 %v1997
        %v1999 = vlaneseq
        %v2000 = vshrl.u32 %v1999, 7
        %v2001 = vsub.s32 %v1998, %v2000
        %v2002 = vrot.slane %v1994, %v2001
        %v2004 = vunpack.c.l.s4 1983009808
        %v2005 = vunpack.c.0.s8 %v2004
        %v2006 = vlaneseq
        %v2007 = vshrl.u32 %v2006, 7
        %v2008 = vsub.s32 %v2005, %v2007
        %v2009 = vrot.slane %v1995, %v2008
        %v2010 = vcombine.low %v1930, %v1936
        %v2011 = vcombine.high %v1930, %v1936
        %v2013 = vunpack.c.l.s4 1983009808
        %v2014 = vunpack.c.0.s8 %v2013
        %v2015 = vlaneseq
        %v2016 = vshrl.u32 %v2015, 7
        %v2017 = vsub.s32 %v2014, %v2016
        %v2018 = vrot.slane %v2010, %v2017
        %v2020 = vunpack.c.l.s4 1983009808
        %v2021 = vunpack.c.0.s8 %v2020
        %v2022 = vlaneseq
        %v2023 = vshrl.u32 %v2022, 7
        %v2024 = vsub.s32 %v2021, %v2023
        %v2025 = vrot.slane %v2011, %v2024
        %v2026 = vcombine.low %v1970, %v1986
        %v2027 = vcombine.high %v1970, %v1986
        %v2029 = vunpack.c.l.s4 1934713408
        %v2030 = vunpack.c.0.s8 %v2029
        %v2031 = vlaneseq
        %v2032 = vshrl.u32 %v2031, 7
        %v2033 = vsub.s32 %v2030, %v2032
        %v2034 = vrot.slane %v2026, %v2033
        %v2036 = vunpack.c.l.s4 1934713408
        %v2037 = vunpack.c.0.s8 %v2036
        %v2038 = vlaneseq
        %v2039 = vshrl.u32 %v2038, 7
        %v2040 = vsub.s32 %v2037, %v2039
        %v2041 = vrot.slane %v2027, %v2040
        %v2042 = vcombine.low %v1977, %v1993
        %v2043 = vcombine.high %v1977, %v1993
        %v2045 = vunpack.c.l.s4 1934713408
        %v2046 = vunpack.c.0.s8 %v2045
        %v2047 = vlaneseq
        %v2048 = vshrl.u32 %v2047, 7
        %v2049 = vsub.s32 %v2046, %v2048
        %v2050 = vrot.slane %v2042, %v2049
        %v2052 = vunpack.c.l.s4 1934713408
        %v2053 = vunpack.c.0.s8 %v2052
        %v2054 = vlaneseq
        %v2055 = vshrl.u32 %v2054, 7
        %v2056 = vsub.s32 %v2053, %v2055
        %v2057 = vrot.slane %v2043, %v2056
        %v2058 = vcombine.low %v2002, %v2018
        %v2059 = vcombine.high %v2002, %v2018
        %v2061 = vunpack.c.l.s4 1934713408
        %v2062 = vunpack.c.0.s8 %v2061
        %v2063 = vlaneseq
        %v2064 = vshrl.u32 %v2063, 7
        %v2065 = vsub.s32 %v2062, %v2064
        %v2066 = vrot.slane %v2058, %v2065
        %v2068 = vunpack.c.l.s4 1934713408
        %v2069 = vunpack.c.0.s8 %v2068
        %v2070 = vlaneseq
        %v2071 = vshrl.u32 %v2070, 7
        %v2072 = vsub.s32 %v2069, %v2071
        %v2073 = vrot.slane %v2059, %v2072
        %v2074 = vcombine.low %v2009, %v2025
        %v2075 = vcombine.high %v2009, %v2025
        %v2077 = vunpack.c.l.s4 1934713408
        %v2078 = vunpack.c.0.s8 %v2077
        %v2079 = vlaneseq
        %v2080 = vshrl.u32 %v2079, 7
        %v2081 = vsub.s32 %v2078, %v2080
        %v2082 = vrot.slane %v2074, %v2081
        %v2084 = vunpack.c.l.s4 1934713408
        %v2085 = vunpack.c.0.s8 %v2084
        %v2086 = vlaneseq
        %v2087 = vshrl.u32 %v2086, 7
        %v2088 = vsub.s32 %v2085, %v2087
        %v2089 = vrot.slane %v2075, %v2088
        %v2090 = vcombine.low %v2034, %v2066
        %v2091 = vcombine.high %v2034, %v2066
        %v2092 = vcombine.low %v2041, %v2073
        %v2093 = vcombine.high %v2041, %v2073
        %v2094 = vcombine.low %v2050, %v2082
        %v2095 = vcombine.high %v2050, %v2082
        %v2096 = vcombine.low %v2057, %v2089
        %v2097 = vcombine.high %v2057, %v2089
        %v2098 = vcombine.low %v1939, %v1945
        %v2099 = vcombine.high %v1939, %v1945
        %v2101 = vunpack.c.l.s4 1983009808
        %v2102 = vunpack.c.0.s8 %v2101
        %v2103 = vlaneseq
        %v2104 = vshrl.u32 %v2103, 7
        %v2105 = vsub.s32 %v2102, %v2104
        %v2106 = vrot.slane %v2098, %v2105
        %v2108 = vunpack.c.l.s4 1983009808
        %v2109 = vunpack.c.0.s8 %v2108
        %v2110 = vlaneseq
        %v2111 = vshrl.u32 %v2110, 7
        %v2112 = vsub.s32 %v2109, %v2111
        %v2113 = vrot.slane %v2099, %v2112
        %v2114 = vcombine.low %v1942, %v1948
        %v2115 = vcombine.high %v1942, %v1948
        %v2117 = vunpack.c.l.s4 1983009808
        %v2118 = vunpack.c.0.s8 %v2117
        %v2119 = vlaneseq
        %v2120 = vshrl.u32 %v2119, 7
        %v2121 = vsub.s32 %v2118, %v2120
        %v2122 = vrot.slane %v2114, %v2121
        %v2124 = vunpack.c.l.s4 1983009808
        %v2125 = vunpack.c.0.s8 %v2124
        %v2126 = vlaneseq
        %v2127 = vshrl.u32 %v2126, 7
        %v2128 = vsub.s32 %v2125, %v2127
        %v2129 = vrot.slane %v2115, %v2128
        %v2130 = vcombine.low %v1951, %v1957
        %v2131 = vcombine.high %v1951, %v1957
        %v2133 = vunpack.c.l.s4 1983009808
        %v2134 = vunpack.c.0.s8 %v2133
        %v2135 = vlaneseq
        %v2136 = vshrl.u32 %v2135, 7
        %v2137 = vsub.s32 %v2134, %v2136
        %v2138 = vrot.slane %v2130, %v2137
        %v2140 = vunpack.c.l.s4 1983009808
        %v2141 = vunpack.c.0.s8 %v2140
        %v2142 = vlaneseq
        %v2143 = vshrl.u32 %v2142, 7
        %v2144 = vsub.s32 %v2141, %v2143
        %v2145 = vrot.slane %v2131, %v2144
        %v2146 = vcombine.low %v1954, %v1960
        %v2147 = vcombine.high %v1954, %v1960
        %v2149 = vunpack.c.l.s4 1983009808
        %v2150 = vunpack.c.0.s8 %v2149
        %v2151 = vlaneseq
        %v2152 = vshrl.u32 %v2151, 7
        %v2153 = vsub.s32 %v2150, %v2152
        %v2154 = vrot.slane %v2146, %v2153
        %v2156 = vunpack.c.l.s4 1983009808
        %v2157 = vunpack.c.0.s8 %v2156
        %v2158 = vlaneseq
        %v2159 = vshrl.u32 %v2158, 7
        %v2160 = vsub.s32 %v2157, %v2159
        %v2161 = vrot.slane %v2147, %v2160
        %v2162 = vcombine.low %v2106, %v2122
        %v2163 = vcombine.high %v2106, %v2122
        %v2165 = vunpack.c.l.s4 1934713408
        %v2166 = vunpack.c.0.s8 %v2165
        %v2167 = vlaneseq
        %v2168 = vshrl.u32 %v2167, 7
        %v2169 = vsub.s32 %v2166, %v2168
        %v2170 = vrot.slane %v2162, %v2169
        %v2172 = vunpack.c.l.s4 1934713408
        %v2173 = vunpack.c.0.s8 %v2172
        %v2174 = vlaneseq
        %v2175 = vshrl.u32 %v2174, 7
        %v2176 = vsub.s32 %v2173, %v2175
        %v2177 = vrot.slane %v2163, %v2176
        %v2178 = vcombine.low %v2113, %v2129
        %v2179 = vcombine.high %v2113, %v2129
        %v2181 = vunpack.c.l.s4 1934713408
        %v2182 = vunpack.c.0.s8 %v2181
        %v2183 = vlaneseq
        %v2184 = vshrl.u32 %v2183, 7
        %v2185 = vsub.s32 %v2182, %v2184
        %v2186 = vrot.slane %v2178, %v2185
        %v2188 = vunpack.c.l.s4 1934713408
        %v2189 = vunpack.c.0.s8 %v2188
        %v2190 = vlaneseq
        %v2191 = vshrl.u32 %v2190, 7
        %v2192 = vsub.s32 %v2189, %v2191
        %v2193 = vrot.slane %v2179, %v2192
        %v2194 = vcombine.low %v2138, %v2154
        %v2195 = vcombine.high %v2138, %v2154
        %v2197 = vunpack.c.l.s4 1934713408
        %v2198 = vunpack.c.0.s8 %v2197
        %v2199 = vlaneseq
        %v2200 = vshrl.u32 %v2199, 7
        %v2201 = vsub.s32 %v2198, %v2200
        %v2202 = vrot.slane %v2194, %v2201
        %v2204 = vunpack.c.l.s4 1934713408
        %v2205 = vunpack.c.0.s8 %v2204
        %v2206 = vlaneseq
        %v2207 = vshrl.u32 %v2206, 7
        %v2208 = vsub.s32 %v2205, %v2207
        %v2209 = vrot.slane %v2195, %v2208
        %v2210 = vcombine.low %v2145, %v2161
        %v2211 = vcombine.high %v2145, %v2161
        %v2213 = vunpack.c.l.s4 1934713408
        %v2214 = vunpack.c.0.s8 %v2213
        %v2215 = vlaneseq
        %v2216 = vshrl.u32 %v2215, 7
        %v2217 = vsub.s32 %v2214, %v2216
        %v2218 = vrot.slane %v2210, %v2217
        %v2220 = vunpack.c.l.s4 1934713408
        %v2221 = vunpack.c.0.s8 %v2220
        %v2222 = vlaneseq
        %v2223 = vshrl.u32 %v2222, 7
        %v2224 = vsub.s32 %v2221, %v2223
        %v2225 = vrot.slane %v2211, %v2224
        %v2226 = vcombine.low %v2170, %v2202
        %v2227 = vcombine.high %v2170, %v2202
        %v2228 = vcombine.low %v2177, %v2209
        %v2229 = vcombine.high %v2177, %v2209
        %v2230 = vcombine.low %v2186, %v2218
        %v2231 = vcombine.high %v2186, %v2218
        %v2232 = vcombine.low %v2193, %v2225
        %v2233 = vcombine.high %v2193, %v2225
        %v2234 = vadd.f32 %v2090, %v1803
        %v2235 = vadd.f32 %v2226, %v1804
        %v2236 = vadd.f32 %v2091, %v1805
        %v2237 = vadd.f32 %v2227, %v1806
        %v2238 = vadd.f32 %v2092, %v1807
        %v2239 = vadd.f32 %v2228, %v1808
        %v2240 = vadd.f32 %v2093, %v1809
        %v2241 = vadd.f32 %v2229, %v1810
        %v2242 = vadd.f32 %v2094, %v1811
        %v2243 = vadd.f32 %v2230, %v1812
        %v2244 = vadd.f32 %v2095, %v1813
        %v2245 = vadd.f32 %v2231, %v1814
        %v2246 = vadd.f32 %v2096, %v1815
        %v2247 = vadd.f32 %v2232, %v1816
        %v2248 = vadd.f32 %v2097, %v1817
        %v2249 = vadd.f32 %v2233, %v1818
        %2266 = vrot.lane.b32.xlu0 %v1884, 126
        %v2267 = vpop.permute.xlu0 %2266
        %2268 = vrot.lane.b32.xlu0 %v1886, 126
        %v2269 = vpop.permute.xlu0 %2268
        %2270 = vrot.lane.b32.xlu0 %v1888, 126
        %v2271 = vpop.permute.xlu0 %2270
        %2272 = vrot.lane.b32.xlu0 %v1890, 126
        %v2273 = vpop.permute.xlu0 %2272
        %2274 = vrot.lane.b32.xlu0 %v1892, 126
        %v2275 = vpop.permute.xlu0 %2274
        %2276 = vrot.lane.b32.xlu0 %v1894, 126
        %v2277 = vpop.permute.xlu0 %2276
        %2278 = vrot.lane.b32.xlu0 %v1896, 126
        %v2279 = vpop.permute.xlu0 %2278
        %2280 = vrot.lane.b32.xlu0 %v1898, 126
        %v2281 = vpop.permute.xlu0 %2280
        %2282 = vrot.lane.b32.xlu0 %v1900, 126
        %v2283 = vpop.permute.xlu0 %2282
        %2284 = vrot.lane.b32.xlu0 %v1902, 126
        %v2285 = vpop.permute.xlu0 %2284
        %2286 = vrot.lane.b32.xlu0 %v1904, 126
        %v2287 = vpop.permute.xlu0 %2286
        %2288 = vrot.lane.b32.xlu0 %v1906, 126
        %v2289 = vpop.permute.xlu0 %2288
        %2290 = vrot.lane.b32.xlu0 %v1908, 126
        %v2291 = vpop.permute.xlu0 %2290
        %2292 = vrot.lane.b32.xlu0 %v1910, 126
        %v2293 = vpop.permute.xlu0 %2292
        %2294 = vrot.lane.b32.xlu0 %v1912, 126
        %v2295 = vpop.permute.xlu0 %2294
        %2296 = vrot.lane.b32.xlu0 %v1914, 126
        %v2297 = vpop.permute.xlu0 %2296
        %v2314 = vmul.f32 %v2234, %v2267
        %v2315 = vmul.f32 %v2235, %v2269
        %v2316 = vmul.f32 %v2236, %v2271
        %v2317 = vmul.f32 %v2237, %v2273
        %v2318 = vmul.f32 %v2238, %v2275
        %v2319 = vmul.f32 %v2239, %v2277
        %v2320 = vmul.f32 %v2240, %v2279
        %v2321 = vmul.f32 %v2241, %v2281
        %v2322 = vmul.f32 %v2242, %v2283
        %v2323 = vmul.f32 %v2243, %v2285
        %v2324 = vmul.f32 %v2244, %v2287
        %v2325 = vmul.f32 %v2245, %v2289
        %v2326 = vmul.f32 %v2246, %v2291
        %v2327 = vmul.f32 %v2247, %v2293
        %v2328 = vmul.f32 %v2248, %v2295
        %v2329 = vmul.f32 %v2249, %v2297
        %v2330 = vcombine.low %v2314, %v2318
        %v2331 = vcombine.high %v2314, %v2318
        %v2333 = vunpack.c.l.s4 1983009808
        %v2334 = vunpack.c.0.s8 %v2333
        %v2335 = vlaneseq
        %v2336 = vshrl.u32 %v2335, 7
        %v2337 = vsub.s32 %v2334, %v2336
        %v2338 = vrot.slane %v2330, %v2337
        %v2340 = vunpack.c.l.s4 1983009808
        %v2341 = vunpack.c.0.s8 %v2340
        %v2342 = vlaneseq
        %v2343 = vshrl.u32 %v2342, 7
        %v2344 = vsub.s32 %v2341, %v2343
        %v2345 = vrot.slane %v2331, %v2344
        %v2346 = vcombine.low %v2316, %v2320
        %v2347 = vcombine.high %v2316, %v2320
        %v2349 = vunpack.c.l.s4 1983009808
        %v2350 = vunpack.c.0.s8 %v2349
        %v2351 = vlaneseq
        %v2352 = vshrl.u32 %v2351, 7
        %v2353 = vsub.s32 %v2350, %v2352
        %v2354 = vrot.slane %v2346, %v2353
        %v2356 = vunpack.c.l.s4 1983009808
        %v2357 = vunpack.c.0.s8 %v2356
        %v2358 = vlaneseq
        %v2359 = vshrl.u32 %v2358, 7
        %v2360 = vsub.s32 %v2357, %v2359
        %v2361 = vrot.slane %v2347, %v2360
        %v2362 = vcombine.low %v2322, %v2326
        %v2363 = vcombine.high %v2322, %v2326
        %v2365 = vunpack.c.l.s4 1983009808
        %v2366 = vunpack.c.0.s8 %v2365
        %v2367 = vlaneseq
        %v2368 = vshrl.u32 %v2367, 7
        %v2369 = vsub.s32 %v2366, %v2368
        %v2370 = vrot.slane %v2362, %v2369
        %v2372 = vunpack.c.l.s4 1983009808
        %v2373 = vunpack.c.0.s8 %v2372
        %v2374 = vlaneseq
        %v2375 = vshrl.u32 %v2374, 7
        %v2376 = vsub.s32 %v2373, %v2375
        %v2377 = vrot.slane %v2363, %v2376
        %v2378 = vcombine.low %v2324, %v2328
        %v2379 = vcombine.high %v2324, %v2328
        %v2381 = vunpack.c.l.s4 1983009808
        %v2382 = vunpack.c.0.s8 %v2381
        %v2383 = vlaneseq
        %v2384 = vshrl.u32 %v2383, 7
        %v2385 = vsub.s32 %v2382, %v2384
        %v2386 = vrot.slane %v2378, %v2385
        %v2388 = vunpack.c.l.s4 1983009808
        %v2389 = vunpack.c.0.s8 %v2388
        %v2390 = vlaneseq
        %v2391 = vshrl.u32 %v2390, 7
        %v2392 = vsub.s32 %v2389, %v2391
        %v2393 = vrot.slane %v2379, %v2392
        %v2394 = vcombine.low %v2338, %v2354
        %v2395 = vcombine.high %v2338, %v2354
        %v2397 = vunpack.c.l.s4 1934713408
        %v2398 = vunpack.c.0.s8 %v2397
        %v2399 = vlaneseq
        %v2400 = vshrl.u32 %v2399, 7
        %v2401 = vsub.s32 %v2398, %v2400
        %v2402 = vrot.slane %v2394, %v2401
        %v2404 = vunpack.c.l.s4 1934713408
        %v2405 = vunpack.c.0.s8 %v2404
        %v2406 = vlaneseq
        %v2407 = vshrl.u32 %v2406, 7
        %v2408 = vsub.s32 %v2405, %v2407
        %v2409 = vrot.slane %v2395, %v2408
        %v2410 = vcombine.low %v2345, %v2361
        %v2411 = vcombine.high %v2345, %v2361
        %v2413 = vunpack.c.l.s4 1934713408
        %v2414 = vunpack.c.0.s8 %v2413
        %v2415 = vlaneseq
        %v2416 = vshrl.u32 %v2415, 7
        %v2417 = vsub.s32 %v2414, %v2416
        %v2418 = vrot.slane %v2410, %v2417
        %v2420 = vunpack.c.l.s4 1934713408
        %v2421 = vunpack.c.0.s8 %v2420
        %v2422 = vlaneseq
        %v2423 = vshrl.u32 %v2422, 7
        %v2424 = vsub.s32 %v2421, %v2423
        %v2425 = vrot.slane %v2411, %v2424
        %v2426 = vcombine.low %v2370, %v2386
        %v2427 = vcombine.high %v2370, %v2386
        %v2429 = vunpack.c.l.s4 1934713408
        %v2430 = vunpack.c.0.s8 %v2429
        %v2431 = vlaneseq
        %v2432 = vshrl.u32 %v2431, 7
        %v2433 = vsub.s32 %v2430, %v2432
        %v2434 = vrot.slane %v2426, %v2433
        %v2436 = vunpack.c.l.s4 1934713408
        %v2437 = vunpack.c.0.s8 %v2436
        %v2438 = vlaneseq
        %v2439 = vshrl.u32 %v2438, 7
        %v2440 = vsub.s32 %v2437, %v2439
        %v2441 = vrot.slane %v2427, %v2440
        %v2442 = vcombine.low %v2377, %v2393
        %v2443 = vcombine.high %v2377, %v2393
        %v2445 = vunpack.c.l.s4 1934713408
        %v2446 = vunpack.c.0.s8 %v2445
        %v2447 = vlaneseq
        %v2448 = vshrl.u32 %v2447, 7
        %v2449 = vsub.s32 %v2446, %v2448
        %v2450 = vrot.slane %v2442, %v2449
        %v2452 = vunpack.c.l.s4 1934713408
        %v2453 = vunpack.c.0.s8 %v2452
        %v2454 = vlaneseq
        %v2455 = vshrl.u32 %v2454, 7
        %v2456 = vsub.s32 %v2453, %v2455
        %v2457 = vrot.slane %v2443, %v2456
        %v2458 = vcombine.low %v2402, %v2434
        %v2459 = vcombine.high %v2402, %v2434
        %v2460 = vcombine.low %v2409, %v2441
        %v2461 = vcombine.high %v2409, %v2441
        %v2462 = vcombine.low %v2418, %v2450
        %v2463 = vcombine.high %v2418, %v2450
        %v2464 = vcombine.low %v2425, %v2457
        %v2465 = vcombine.high %v2425, %v2457
        %v2466 = vcombine.low %v2315, %v2319
        %v2467 = vcombine.high %v2315, %v2319
        %v2469 = vunpack.c.l.s4 1983009808
        %v2470 = vunpack.c.0.s8 %v2469
        %v2471 = vlaneseq
        %v2472 = vshrl.u32 %v2471, 7
        %v2473 = vsub.s32 %v2470, %v2472
        %v2474 = vrot.slane %v2466, %v2473
        %v2476 = vunpack.c.l.s4 1983009808
        %v2477 = vunpack.c.0.s8 %v2476
        %v2478 = vlaneseq
        %v2479 = vshrl.u32 %v2478, 7
        %v2480 = vsub.s32 %v2477, %v2479
        %v2481 = vrot.slane %v2467, %v2480
        %v2482 = vcombine.low %v2317, %v2321
        %v2483 = vcombine.high %v2317, %v2321
        %v2485 = vunpack.c.l.s4 1983009808
        %v2486 = vunpack.c.0.s8 %v2485
        %v2487 = vlaneseq
        %v2488 = vshrl.u32 %v2487, 7
        %v2489 = vsub.s32 %v2486, %v2488
        %v2490 = vrot.slane %v2482, %v2489
        %v2492 = vunpack.c.l.s4 1983009808
        %v2493 = vunpack.c.0.s8 %v2492
        %v2494 = vlaneseq
        %v2495 = vshrl.u32 %v2494, 7
        %v2496 = vsub.s32 %v2493, %v2495
        %v2497 = vrot.slane %v2483, %v2496
        %v2498 = vcombine.low %v2323, %v2327
        %v2499 = vcombine.high %v2323, %v2327
        %v2501 = vunpack.c.l.s4 1983009808
        %v2502 = vunpack.c.0.s8 %v2501
        %v2503 = vlaneseq
        %v2504 = vshrl.u32 %v2503, 7
        %v2505 = vsub.s32 %v2502, %v2504
        %v2506 = vrot.slane %v2498, %v2505
        %v2508 = vunpack.c.l.s4 1983009808
        %v2509 = vunpack.c.0.s8 %v2508
        %v2510 = vlaneseq
        %v2511 = vshrl.u32 %v2510, 7
        %v2512 = vsub.s32 %v2509, %v2511
        %v2513 = vrot.slane %v2499, %v2512
        %v2514 = vcombine.low %v2325, %v2329
        %v2515 = vcombine.high %v2325, %v2329
        %v2517 = vunpack.c.l.s4 1983009808
        %v2518 = vunpack.c.0.s8 %v2517
        %v2519 = vlaneseq
        %v2520 = vshrl.u32 %v2519, 7
        %v2521 = vsub.s32 %v2518, %v2520
        %v2522 = vrot.slane %v2514, %v2521
        %v2524 = vunpack.c.l.s4 1983009808
        %v2525 = vunpack.c.0.s8 %v2524
        %v2526 = vlaneseq
        %v2527 = vshrl.u32 %v2526, 7
        %v2528 = vsub.s32 %v2525, %v2527
        %v2529 = vrot.slane %v2515, %v2528
        %v2530 = vcombine.low %v2474, %v2490
        %v2531 = vcombine.high %v2474, %v2490
        %v2533 = vunpack.c.l.s4 1934713408
        %v2534 = vunpack.c.0.s8 %v2533
        %v2535 = vlaneseq
        %v2536 = vshrl.u32 %v2535, 7
        %v2537 = vsub.s32 %v2534, %v2536
        %v2538 = vrot.slane %v2530, %v2537
        %v2540 = vunpack.c.l.s4 1934713408
        %v2541 = vunpack.c.0.s8 %v2540
        %v2542 = vlaneseq
        %v2543 = vshrl.u32 %v2542, 7
        %v2544 = vsub.s32 %v2541, %v2543
        %v2545 = vrot.slane %v2531, %v2544
        %v2546 = vcombine.low %v2481, %v2497
        %v2547 = vcombine.high %v2481, %v2497
        %v2549 = vunpack.c.l.s4 1934713408
        %v2550 = vunpack.c.0.s8 %v2549
        %v2551 = vlaneseq
        %v2552 = vshrl.u32 %v2551, 7
        %v2553 = vsub.s32 %v2550, %v2552
        %v2554 = vrot.slane %v2546, %v2553
        %v2556 = vunpack.c.l.s4 1934713408
        %v2557 = vunpack.c.0.s8 %v2556
        %v2558 = vlaneseq
        %v2559 = vshrl.u32 %v2558, 7
        %v2560 = vsub.s32 %v2557, %v2559
        %v2561 = vrot.slane %v2547, %v2560
        %v2562 = vcombine.low %v2506, %v2522
        %v2563 = vcombine.high %v2506, %v2522
        %v2565 = vunpack.c.l.s4 1934713408
        %v2566 = vunpack.c.0.s8 %v2565
        %v2567 = vlaneseq
        %v2568 = vshrl.u32 %v2567, 7
        %v2569 = vsub.s32 %v2566, %v2568
        %v2570 = vrot.slane %v2562, %v2569
        %v2572 = vunpack.c.l.s4 1934713408
        %v2573 = vunpack.c.0.s8 %v2572
        %v2574 = vlaneseq
        %v2575 = vshrl.u32 %v2574, 7
        %v2576 = vsub.s32 %v2573, %v2575
        %v2577 = vrot.slane %v2563, %v2576
        %v2578 = vcombine.low %v2513, %v2529
        %v2579 = vcombine.high %v2513, %v2529
        %v2581 = vunpack.c.l.s4 1934713408
        %v2582 = vunpack.c.0.s8 %v2581
        %v2583 = vlaneseq
        %v2584 = vshrl.u32 %v2583, 7
        %v2585 = vsub.s32 %v2582, %v2584
        %v2586 = vrot.slane %v2578, %v2585
        %v2588 = vunpack.c.l.s4 1934713408
        %v2589 = vunpack.c.0.s8 %v2588
        %v2590 = vlaneseq
        %v2591 = vshrl.u32 %v2590, 7
        %v2592 = vsub.s32 %v2589, %v2591
        %v2593 = vrot.slane %v2579, %v2592
        %v2594 = vcombine.low %v2538, %v2570
        %v2595 = vcombine.high %v2538, %v2570
        %v2596 = vcombine.low %v2545, %v2577
        %v2597 = vcombine.high %v2545, %v2577
        %v2598 = vcombine.low %v2554, %v2586
        %v2599 = vcombine.high %v2554, %v2586
        %v2600 = vcombine.low %v2561, %v2593
        %v2601 = vcombine.high %v2561, %v2593
        %2603 = vrot.lane.b32.xlu0 %v2459, 2
        %v2604 = vpop.permute.xlu0 %2603
        %2607 = vrot.lane.b32.xlu0 %v2460, 4
        %v2608 = vpop.permute.xlu0 %2607
        %2611 = vrot.lane.b32.xlu0 %v2461, 6
        %v2612 = vpop.permute.xlu0 %2611
        %2615 = vrot.lane.b32.xlu0 %v2462, 8
        %v2616 = vpop.permute.xlu0 %2615
        %2619 = vrot.lane.b32.xlu0 %v2463, 10
        %v2620 = vpop.permute.xlu0 %2619
        %2623 = vrot.lane.b32.xlu0 %v2464, 12
        %v2624 = vpop.permute.xlu0 %2623
        %2627 = vrot.lane.b32.xlu0 %v2465, 14
        %v2628 = vpop.permute.xlu0 %2627
        %2631 = vrot.lane.b32.xlu0 %v2594, 16
        %v2632 = vpop.permute.xlu0 %2631
        %2635 = vrot.lane.b32.xlu0 %v2595, 18
        %v2636 = vpop.permute.xlu0 %2635
        %2639 = vrot.lane.b32.xlu0 %v2596, 20
        %v2640 = vpop.permute.xlu0 %2639
        %2643 = vrot.lane.b32.xlu0 %v2597, 22
        %v2644 = vpop.permute.xlu0 %2643
        %2647 = vrot.lane.b32.xlu0 %v2598, 24
        %v2648 = vpop.permute.xlu0 %2647
        %2651 = vrot.lane.b32.xlu0 %v2599, 26
        %v2652 = vpop.permute.xlu0 %2651
        %2655 = vrot.lane.b32.xlu0 %v2600, 28
        %v2656 = vpop.permute.xlu0 %2655
        %2659 = vrot.lane.b32.xlu0 %v2601, 30
        %v2660 = vpop.permute.xlu0 %2659
        %vm2662 = vcmask 15360
        %v2663 = vsel %vm2662, %v2458, %v2604
        %vm2664 = vcmask 31744
        %v2665 = vsel %vm2664, %v2663, %v2608
        %vm2666 = vcmask 48128
        %v2667 = vsel %vm2666, %v2665, %v2612
        %vm2668 = vcmask 64512
        %v2669 = vsel %vm2668, %v2667, %v2616
        %vm2670 = vcmask 80896
        %v2671 = vsel %vm2670, %v2669, %v2620
        %vm2672 = vcmask 97280
        %v2673 = vsel %vm2672, %v2671, %v2624
        %vm2674 = vcmask 113664
        %v2675 = vsel %vm2674, %v2673, %v2628
        %vm2676 = vcmask 130048
        %v2677 = vsel %vm2676, %v2675, %v2632
        %vm2678 = vcmask 146432
        %v2679 = vsel %vm2678, %v2677, %v2636
        %vm2680 = vcmask 162816
        %v2681 = vsel %vm2680, %v2679, %v2640
        %vm2682 = vcmask 179200
        %v2683 = vsel %vm2682, %v2681, %v2644
        %vm2684 = vcmask 195584
        %v2685 = vsel %vm2684, %v2683, %v2648
        %vm2686 = vcmask 211968
        %v2687 = vsel %vm2686, %v2685, %v2652
        %vm2688 = vcmask 228352
        %v2689 = vsel %vm2688, %v2687, %v2656
        %vm2690 = vcmask 244736
        %v2691 = vsel %vm2690, %v2689, %v2660
        %vm2692 = vcmask 261120
        %2693 = vst.msk [vmem:[%s375] sm:$0xff] %vm2692, %v2691
        %v2694 = vlog2.pop %v1884
        %v2695 = vmul.f32 %v2694, 0.6931472
        %v2696 = vlog2.pop %v1886
        %v2697 = vmul.f32 %v2696, 0.6931472
        %v2698 = vlog2.pop %v1888
        %v2699 = vmul.f32 %v2698, 0.6931472
        %v2700 = vlog2.pop %v1890
        %v2701 = vmul.f32 %v2700, 0.6931472
        %v2702 = vlog2.pop %v1892
        %v2703 = vmul.f32 %v2702, 0.6931472
        %v2704 = vlog2.pop %v1894
        %v2705 = vmul.f32 %v2704, 0.6931472
        %v2706 = vlog2.pop %v1896
        %v2707 = vmul.f32 %v2706, 0.6931472
        %v2708 = vlog2.pop %v1898
        %v2709 = vmul.f32 %v2708, 0.6931472
        %v2710 = vlog2.pop %v1900
        %v2711 = vmul.f32 %v2710, 0.6931472
        %v2712 = vlog2.pop %v1902
        %v2713 = vmul.f32 %v2712, 0.6931472
        %v2714 = vlog2.pop %v1904
        %v2715 = vmul.f32 %v2714, 0.6931472
        %v2716 = vlog2.pop %v1906
        %v2717 = vmul.f32 %v2716, 0.6931472
        %v2718 = vlog2.pop %v1908
        %v2719 = vmul.f32 %v2718, 0.6931472
        %v2720 = vlog2.pop %v1910
        %v2721 = vmul.f32 %v2720, 0.6931472
        %v2722 = vlog2.pop %v1912
        %v2723 = vmul.f32 %v2722, 0.6931472
        %v2724 = vlog2.pop %v1914
        %v2725 = vmul.f32 %v2724, 0.6931472
        %2742 = vrot.lane.b32.xlu0 %v2695, 126
        %v2743 = vpop.permute.xlu0 %2742
        %2744 = vrot.lane.b32.xlu0 %v2697, 126
        %v2745 = vpop.permute.xlu0 %2744
        %2746 = vrot.lane.b32.xlu0 %v2699, 126
        %v2747 = vpop.permute.xlu0 %2746
        %2748 = vrot.lane.b32.xlu0 %v2701, 126
        %v2749 = vpop.permute.xlu0 %2748
        %2750 = vrot.lane.b32.xlu0 %v2703, 126
        %v2751 = vpop.permute.xlu0 %2750
        %2752 = vrot.lane.b32.xlu0 %v2705, 126
        %v2753 = vpop.permute.xlu0 %2752
        %2754 = vrot.lane.b32.xlu0 %v2707, 126
        %v2755 = vpop.permute.xlu0 %2754
        %2756 = vrot.lane.b32.xlu0 %v2709, 126
        %v2757 = vpop.permute.xlu0 %2756
        %2758 = vrot.lane.b32.xlu0 %v2711, 126
        %v2759 = vpop.permute.xlu0 %2758
        %2760 = vrot.lane.b32.xlu0 %v2713, 126
        %v2761 = vpop.permute.xlu0 %2760
        %2762 = vrot.lane.b32.xlu0 %v2715, 126
        %v2763 = vpop.permute.xlu0 %2762
        %2764 = vrot.lane.b32.xlu0 %v2717, 126
        %v2765 = vpop.permute.xlu0 %2764
        %2766 = vrot.lane.b32.xlu0 %v2719, 126
        %v2767 = vpop.permute.xlu0 %2766
        %2768 = vrot.lane.b32.xlu0 %v2721, 126
        %v2769 = vpop.permute.xlu0 %2768
        %2770 = vrot.lane.b32.xlu0 %v2723, 126
        %v2771 = vpop.permute.xlu0 %2770
        %2772 = vrot.lane.b32.xlu0 %v2725, 126
        %v2773 = vpop.permute.xlu0 %2772
        %v2790 = vsel %vm2662, %v2743, 0.0
        %2791 = vadd.xlane.f32.xlu0 %v2790
        %v2792 = vpop.xlane.xlu0 %2791
        %v2793 = vsel %vm2662, %v2745, 0.0
        %2794 = vadd.xlane.f32.xlu0 %v2793
        %v2795 = vpop.xlane.xlu0 %2794
        %v2796 = vsel %vm2662, %v2747, 0.0
        %2797 = vadd.xlane.f32.xlu0 %v2796
        %v2798 = vpop.xlane.xlu0 %2797
        %v2799 = vsel %vm2662, %v2749, 0.0
        %2800 = vadd.xlane.f32.xlu0 %v2799
        %v2801 = vpop.xlane.xlu0 %2800
        %v2802 = vsel %vm2662, %v2751, 0.0
        %2803 = vadd.xlane.f32.xlu0 %v2802
        %v2804 = vpop.xlane.xlu0 %2803
        %v2805 = vsel %vm2662, %v2753, 0.0
        %2806 = vadd.xlane.f32.xlu0 %v2805
        %v2807 = vpop.xlane.xlu0 %2806
        %v2808 = vsel %vm2662, %v2755, 0.0
        %2809 = vadd.xlane.f32.xlu0 %v2808
        %v2810 = vpop.xlane.xlu0 %2809
        %v2811 = vsel %vm2662, %v2757, 0.0
        %2812 = vadd.xlane.f32.xlu0 %v2811
        %v2813 = vpop.xlane.xlu0 %2812
        %v2814 = vsel %vm2662, %v2759, 0.0
        %2815 = vadd.xlane.f32.xlu0 %v2814
        %v2816 = vpop.xlane.xlu0 %2815
        %v2817 = vsel %vm2662, %v2761, 0.0
        %2818 = vadd.xlane.f32.xlu0 %v2817
        %v2819 = vpop.xlane.xlu0 %2818
        %v2820 = vsel %vm2662, %v2763, 0.0
        %2821 = vadd.xlane.f32.xlu0 %v2820
        %v2822 = vpop.xlane.xlu0 %2821
        %v2823 = vsel %vm2662, %v2765, 0.0
        %2824 = vadd.xlane.f32.xlu0 %v2823
        %v2825 = vpop.xlane.xlu0 %2824
        %v2826 = vsel %vm2662, %v2767, 0.0
        %2827 = vadd.xlane.f32.xlu0 %v2826
        %v2828 = vpop.xlane.xlu0 %2827
        %v2829 = vsel %vm2662, %v2769, 0.0
        %2830 = vadd.xlane.f32.xlu0 %v2829
        %v2831 = vpop.xlane.xlu0 %2830
        %v2832 = vsel %vm2662, %v2771, 0.0
        %2833 = vadd.xlane.f32.xlu0 %v2832
        %v2834 = vpop.xlane.xlu0 %2833
        %v2835 = vsel %vm2662, %v2773, 0.0
        %2836 = vadd.xlane.f32.xlu0 %v2835
        %v2837 = vpop.xlane.xlu0 %2836
        %v2854 = vlaneseq
        %v2855 = vand.u32 %v2854, 127
        %v2856 = vlaneseq
        %v2857 = vshrl.u32 %v2856, 7
        %v2858 = vsub.s32 %v2855, %v2857
        %v2859 = vrot.slane %v2792, %v2858
        %v2860 = vadd.s32 %v2855, 4294967288
        %v2861 = vlaneseq
        %v2862 = vshrl.u32 %v2861, 7
        %v2863 = vsub.s32 %v2860, %v2862
        %v2864 = vrot.slane %v2795, %v2863
        %vm2865 = vcmask 130112
        %v2866 = vsel %vm2865, %v2864, %v2859
        %v2867 = vlaneseq
        %v2868 = vshrl.u32 %v2867, 7
        %v2869 = vsub.s32 %v2855, %v2868
        %v2870 = vrot.slane %v2798, %v2869
        %v2871 = vlaneseq
        %v2872 = vshrl.u32 %v2871, 7
        %v2873 = vsub.s32 %v2860, %v2872
        %v2874 = vrot.slane %v2801, %v2873
        %v2875 = vsel %vm2865, %v2874, %v2870
        %v2876 = vlaneseq
        %v2877 = vshrl.u32 %v2876, 7
        %v2878 = vsub.s32 %v2855, %v2877
        %v2879 = vrot.slane %v2804, %v2878
        %v2880 = vlaneseq
        %v2881 = vshrl.u32 %v2880, 7
        %v2882 = vsub.s32 %v2860, %v2881
        %v2883 = vrot.slane %v2807, %v2882
        %v2884 = vsel %vm2865, %v2883, %v2879
        %v2885 = vlaneseq
        %v2886 = vshrl.u32 %v2885, 7
        %v2887 = vsub.s32 %v2855, %v2886
        %v2888 = vrot.slane %v2810, %v2887
        %v2889 = vlaneseq
        %v2890 = vshrl.u32 %v2889, 7
        %v2891 = vsub.s32 %v2860, %v2890
        %v2892 = vrot.slane %v2813, %v2891
        %v2893 = vsel %vm2865, %v2892, %v2888
        %v2894 = vlaneseq
        %v2895 = vshrl.u32 %v2894, 7
        %v2896 = vsub.s32 %v2855, %v2895
        %v2897 = vrot.slane %v2816, %v2896
        %v2898 = vlaneseq
        %v2899 = vshrl.u32 %v2898, 7
        %v2900 = vsub.s32 %v2860, %v2899
        %v2901 = vrot.slane %v2819, %v2900
        %v2902 = vsel %vm2865, %v2901, %v2897
        %v2903 = vlaneseq
        %v2904 = vshrl.u32 %v2903, 7
        %v2905 = vsub.s32 %v2855, %v2904
        %v2906 = vrot.slane %v2822, %v2905
        %v2907 = vlaneseq
        %v2908 = vshrl.u32 %v2907, 7
        %v2909 = vsub.s32 %v2860, %v2908
        %v2910 = vrot.slane %v2825, %v2909
        %v2911 = vsel %vm2865, %v2910, %v2906
        %v2912 = vlaneseq
        %v2913 = vshrl.u32 %v2912, 7
        %v2914 = vsub.s32 %v2855, %v2913
        %v2915 = vrot.slane %v2828, %v2914
        %v2916 = vlaneseq
        %v2917 = vshrl.u32 %v2916, 7
        %v2918 = vsub.s32 %v2860, %v2917
        %v2919 = vrot.slane %v2831, %v2918
        %v2920 = vsel %vm2865, %v2919, %v2915
        %v2921 = vlaneseq
        %v2922 = vshrl.u32 %v2921, 7
        %v2923 = vsub.s32 %v2855, %v2922
        %v2924 = vrot.slane %v2834, %v2923
        %v2925 = vlaneseq
        %v2926 = vshrl.u32 %v2925, 7
        %v2927 = vsub.s32 %v2860, %v2926
        %v2928 = vrot.slane %v2837, %v2927
        %v2929 = vsel %vm2865, %v2928, %v2924
        %vm2930 = vcmask 1041409
        %v2931 = vsel %vm2930, %v2875, %v2866
        %vm2932 = vcmask 1042434
        %v2933 = vsel %vm2932, %v2884, %v2931
        %vm2934 = vcmask 1043459
        %v2935 = vsel %vm2934, %v2893, %v2933
        %vm2936 = vcmask 1044484
        %v2937 = vsel %vm2936, %v2902, %v2935
        %vm2938 = vcmask 1045509
        %v2939 = vsel %vm2938, %v2911, %v2937
        %vm2940 = vcmask 1046534
        %v2941 = vsel %vm2940, %v2920, %v2939
        %vm2942 = vcmask 1047559
        %v2943 = vsel %vm2942, %v2929, %v2941
        %v2945 = vsel %vm2676, %v2943, 0.0
        %2946 = vadd.xlane.f32.xlu0 %v2945
        %v2947 = vpop.xlane.xlu0 %2946
        %v2948 = vrot.slane %v2947, 4
        %v2949 = vadd.f32 %v2947, %v2948
        %v2950 = vrot.slane %v2949, 2
        %v2951 = vadd.f32 %v2949, %v2950
        %v2952 = vrot.slane %v2951, 1
        %v2953 = vadd.f32 %v2951, %v2952
        %vm2954 = vcmask 0
        %2955 = vst.msk [vmem:[%s408] sm:$0x1] %vm2954, %v2953
        %s2956 = sand.u32 %s228, 1
        %s2957 = scalar_lea.sflag [#allocation3], %s2956
        %s2958 = sand.u32 %s228, 1
        %s2959 = smul.addr %s2958, 8
        %s2960 = scalar_lea.vmem [#allocation2], %s2959
        %p2961 = scmp.lt.s32.totalorder %s28, 1
        %s2962 = scalar_select %p2961, %s28, 1
        %p2963 = scmp.lt.s32.totalorder %s29, 1
        %s2964 = scalar_select %p2963, %s29, 1
        %s2965 = smul.addr %s2962, 2
        %s2966 = sadd.s32 %s2964, %s2965
        %s2967 = scalar_lea.vmem %s9, %s2966
        // Predicated region
        $region53: #{tpu_custom_call.1} parent=51 // pred_check
          %p2968 = pneg %p238
        $region54: #{tpu_custom_call.1} parent=51 // pred_check_branch
          %2970 = sbr.rel (%p2968) target = $region56
        $region55: #{tpu_custom_call.1} parent=51 // pred_region
          %s2972 = ssub.s32 128, 128
          %2973 = vsyncadd %s2957, %s2972
          %s2974 = smul.addr %s28, 2
          %s2975 = sadd.s32 %s29, %s2974
          %s2976 = smul.addr %s2975, 128
          %s2977 = scalar_lea.hbm %s8, %s2976
          %s2979 = sshll.u32 %s2960, 4
          %s2980 = int_to_ptr.vmem [resolvable:$true] %s2979
          %2982 = dma.vmem_to_hbm [thread:$0]  %s2980, 128, %s2977, %s2957
        $region56: #{tpu_custom_call.1} parent=51 // pred_fallthru
          _
        // Predicated region
        $region57: #{tpu_custom_call.1} parent=51 // pred_check
          %p2983 = pneg %p266
        $region58: #{tpu_custom_call.1} parent=51 // pred_check_branch
          %2985 = sbr.rel (%p2983) target = $region60
        $region59: #{tpu_custom_call.1} parent=51 // pred_region
          _
        $region60: #{tpu_custom_call.1} parent=51 // pred_fallthru
          _
      $region52: #{tpu_custom_call.1} parent=5 // pred_fallthru
        _
      %p2986 = scmp.le.s32.totalorder 2, %s19
      // Predicated region
      $region61: #{tpu_custom_call.1} parent=5 // pred_check
        %p2987 = pneg %p2986
      $region62: #{tpu_custom_call.1} parent=5 // pred_check_branch
        %2989 = sbr.rel (%p2987) target = $region64
      $region63: #{tpu_custom_call.1} parent=5 // pred_region
        %s2990 = ssub.s32 %s19, 2
        // Predicated region
        $region65: #{tpu_custom_call.1} parent=63 // pred_check
          %p2991 = pneg %p244
        $region66: #{tpu_custom_call.1} parent=63 // pred_check_branch
          %2993 = sbr.rel (%p2991) target = $region68
        $region67: #{tpu_custom_call.1} parent=63 // pred_region
          %s2994 = sand.u32 %s229, 1
          %s2995 = scalar_lea.sflag [#allocation3], %s2994
          %s2996 = sand.u32 %s229, 1
          %s2997 = smul.addr %s2996, 8
          %s2998 = scalar_lea.vmem [#allocation2], %s2997
          %2999 = dma.done %s2995, 128
        $region68: #{tpu_custom_call.1} parent=63 // pred_fallthru
          _
        // Predicated region
        $region69: #{tpu_custom_call.1} parent=63 // pred_check
          %p3000 = pneg %p272
        $region70: #{tpu_custom_call.1} parent=63 // pred_check_branch
          %3002 = sbr.rel (%p3000) target = $region72
        $region71: #{tpu_custom_call.1} parent=63 // pred_region
          %p3003 = scmp.lt.s32.totalorder %s30, 1
          %s3004 = scalar_select %p3003, %s30, 1
          %p3005 = scmp.lt.s32.totalorder %s31, 1
          %s3006 = scalar_select %p3005, %s31, 1
          %s3007 = smul.addr %s3004, 2
          %s3008 = sadd.s32 %s3006, %s3007
          %s3009 = scalar_lea.vmem %s9, %s3008
        $region72: #{tpu_custom_call.1} parent=63 // pred_fallthru
          _
      $region64: #{tpu_custom_call.1} parent=5 // pred_fallthru
        _
    $region6: #{tpu_custom_call.1} parent=1 // loop_footer
      %s23 = sadd.s32 1, %s19
    $region7: #{tpu_custom_call.1} parent=1 // loop_footer_branch
      %18 = sbr.rel target = $region3
    $region8: #{tpu_custom_call.1} parent=1 // loop_exit
      _
    %3010 = vsyncpa [#allocation3], 1
    %s3011 = scalar_lea.sflag [#allocation3], 1
    %3012 = vsyncpa %s3011, 1

</llo_original>
